<compile_context>
chip_gen: v7x
topology: tpu7x:2x2x1
jax: 0.10.0
libtpu: 0.0.40
codegen_flags: <defaults>
</compile_context>

<pallas_src>
import functools

import numpy as np
import jax
import jax.numpy as jnp
from jax.experimental import pallas as pl
from jax.experimental.pallas import tpu as pltpu


def _round_up(x, m):
    return (x + m - 1) // m * m


def _plan_lanes(D, n_ranks):
    """Lane tiling for the flattened LUT axis.

    Single block (grid=(1,)) whenever the f32 bank comfortably fits VMEM
    (true for all realistic LUTGenerator sizes); otherwise stream the bank
    in 8K-lane tiles.
    Returns (tn, num_blocks); the bank is padded to tn * num_blocks lanes.
    """
    Dp = _round_up(D, 128)
    if n_ranks * Dp * 4 <= 8 * 1024 * 1024:
        return Dp, 1
    tn = 8 * 1024
    return tn, -(-Dp // tn)


# ----------------------------------------------------------------------------
# Fused Pallas kernel
# ----------------------------------------------------------------------------

def _fused_kernel(x_ref, w1_ref, b1_ref, lut_ref, w_out_ref, luts_out_ref):
    """weights = x @ w1 + b1 ; luts_block = weights @ lut_block.

    Both contractions are tiny (F <= a few hundred, R <= ~16), so they are
    unrolled broadcast-mul-adds on the VPU; no MXU tile, no operand padding.
    """
    x = x_ref[...]                       # (B, F) f32
    w1 = w1_ref[...]                     # (F, R) f32
    B = x.shape[0]
    F = x.shape[1]
    R = w1.shape[1]

    # --- Linear 1 (with bias), unrolled over the feature axis ----------------
    w = jnp.broadcast_to(b1_ref[...], (B, R))          # hoisted broadcast
    for f in range(F):                                  # static unroll
        w = w + x[:, f:f + 1] * w1[f:f + 1, :]
    w_out_ref[...] = w

    # --- Linear 2 (no bias): rank-1 accumulation into the output block -------
    # One bank row is loaded per step, so only ~2*tn/128 vregs are live.
    luts_out_ref[...] = w[:, 0:1] * lut_ref[0:1, :]
    for r in range(1, R):                               # static unroll
        luts_out_ref[...] += w[:, r:r + 1] * lut_ref[r:r + 1, :]


# ----------------------------------------------------------------------------
# Forward wrapper
# ----------------------------------------------------------------------------

@functools.partial(jax.jit, static_argnums=(2, 3))
def lut_generator_forward(x, params, n_colors, n_vertices):
    """x: (B, n_feats) f32 -> (weights (B, n_ranks), luts (B, C, V, ..., V))."""
    w1 = params["w1"]          # (F, R) f32
    b1 = params["b1"]          # (1, R) f32
    bank = params["bank"]      # (R, tn * nb) f32, padded at init

    B, F = x.shape
    Fw, R = w1.shape
    D = n_colors * n_vertices ** n_colors
    tn, nb = _plan_lanes(D, R)
    assert bank.shape == (R, tn * nb), (bank.shape, tn, nb)

    weights, luts_flat = pl.pallas_call(
        _fused_kernel,
        out_shape=(
            jax.ShapeDtypeStruct((B, R), jnp.float32),
            jax.ShapeDtypeStruct((B, D), jnp.float32),   # Pallas masks the last
        ),                                               # partial lane tile
        grid_spec=pltpu.PrefetchScalarGridSpec(
            num_scalar_prefetch=0,
            grid=(nb,),                                  # (1,) for realistic D
            in_specs=[
                pl.BlockSpec((B, Fw), lambda j: (0, 0)),   # x       (tiny, resident)
                pl.BlockSpec((Fw, R), lambda j: (0, 0)),   # w1      (tiny, resident)
                pl.BlockSpec((1, R), lambda j: (0, 0)),    # b1      (tiny, resident)
                pl.BlockSpec((R, tn), lambda j: (0, j)),   # LUT bank (dominant stream)
            ],
            out_specs=[
                pl.BlockSpec((B, R), lambda j: (0, 0)),    # weights (revisited)
                pl.BlockSpec((B, tn), lambda j: (0, j)),   # luts    (lane-dense)
            ],
        ),
        compiler_params=pltpu.CompilerParams(
            dimension_semantics=("arbitrary",),
            vmem_limit_bytes=48 * 1024 * 1024,
        ),
    )(x, w1, b1, bank)

    luts = luts_flat.reshape(B, -1, *((n_vertices,) * n_colors))
    return weights, luts


# ----------------------------------------------------------------------------
# Parameters (deterministic, mirroring LUTGenerator.init_weights)
# ----------------------------------------------------------------------------

def init_params(key, n_colors, n_vertices, n_feats, n_ranks):
    D = n_colors * n_vertices ** n_colors

    # weights_generator: Linear weight ~ U(-1/sqrt(F), 1/sqrt(F)), bias = ones.
    bound = 1.0 / float(np.sqrt(n_feats))
    w1 = jax.random.uniform(key, (n_feats, n_ranks), jnp.float32, -bound, bound)
    b1 = jnp.ones((1, n_ranks), jnp.float32)

    # basis_luts_bank: rank 0 = identity LUT (meshgrid / (V-1), channel-flipped),
    # remaining ranks = zeros, exactly as init_weights().  Kept in float32
    # (tiny) and padded once, here, to the lane plan -- the forward pass does
    # no padding/casting work.
    axes = np.meshgrid(*([np.arange(n_vertices)] * n_colors), indexing="ij")
    ident = np.stack(axes, axis=0).astype(np.float64) / (n_vertices - 1)
    ident = ident[::-1]                                  # torch .flip(0)

    tn, nb = _plan_lanes(D, n_ranks)
    bank = np.zeros((n_ranks, tn * nb), dtype=np.float32)
    bank[0, :D] = ident.reshape(-1)

    return {"w1": w1, "b1": b1, "bank": jnp.asarray(bank)}


# ----------------------------------------------------------------------------
# Demo / self-check
# ----------------------------------------------------------------------------

if __name__ == "__main__":
    n_colors, n_vertices, n_feats, n_ranks = 3, 9, 32, 8
    batch = 2

    key = jax.random.PRNGKey(0)
    pkey, xkey = jax.random.split(key)
    params = init_params(pkey, n_colors, n_vertices, n_feats, n_ranks)
    x = jax.random.normal(xkey, (batch, n_feats), jnp.float32)

    weights, luts = lut_generator_forward(x, params, n_colors, n_vertices)
    weights, luts = jax.block_until_ready((weights, luts))

    assert weights.shape == (batch, n_ranks), weights.shape
    assert luts.shape == (batch, n_colors) + (n_vertices,) * n_colors, luts.shape

    # float32 numpy reference for both Linear layers
    D = n_colors * n_vertices ** n_colors
    x_np = np.asarray(x, np.float32)
    w1_np = np.asarray(params["w1"], np.float32)
    b1_np = np.asarray(params["b1"], np.float32)
    bank_np = np.asarray(params["bank"], np.float32)[:, :D]
    ref_weights = x_np @ w1_np + b1_np
    ref_luts = (ref_weights @ bank_np).reshape(luts.shape)

    np.testing.assert_allclose(np.asarray(weights), ref_weights, rtol=1e-5, atol=1e-5)
    np.testing.assert_allclose(np.asarray(luts), ref_luts, rtol=1e-5, atol=1e-5)
    assert bool(jnp.all(jnp.isfinite(weights))) and bool(jnp.all(jnp.isfinite(luts)))

    print("KERNEL_OK")
</pallas_src>

<mosaic_0001>
module attributes {stable_mosaic.version = 11 : i64} {
  func.func @_fused_kernel(%arg0: i32, %arg1: memref<2x32xf32, #tpu.memory_space<vmem>>, %arg2: memref<32x8xf32, #tpu.memory_space<vmem>>, %arg3: memref<1x8xf32, #tpu.memory_space<vmem>>, %arg4: memref<8x2304xf32, #tpu.memory_space<vmem>>, %arg5: memref<2x8xf32, #tpu.memory_space<vmem>>, %arg6: memref<2x2304xf32, #tpu.memory_space<vmem>>) attributes {dimension_semantics = [#tpu.dimension_semantics<arbitrary>], iteration_bounds = array<i64: 1>, scalar_prefetch = 0 : i64, scratch_operands = 0 : i64, tpu.core_type = #tpu.core_type<tc>, window_params = [{pipeline_mode = #tpu.pipeline_mode<synchronous>, transform_indices = @transform_0, window_bounds = array<i64: 2, 32>}, {pipeline_mode = #tpu.pipeline_mode<synchronous>, transform_indices = @transform_1, window_bounds = array<i64: 32, 8>}, {pipeline_mode = #tpu.pipeline_mode<synchronous>, transform_indices = @transform_2, window_bounds = array<i64: 1, 8>}, {transform_indices = @transform_3, window_bounds = array<i64: 8, 2304>}, {pipeline_mode = #tpu.pipeline_mode<synchronous>, transform_indices = @transform_4, window_bounds = array<i64: 2, 8>}, {transform_indices = @transform_5, window_bounds = array<i64: 2, 2304>}]} {
    %c0 = arith.constant 0 : index
    %c0_0 = arith.constant 0 : index
    %0 = vector.load %arg1[%c0, %c0_0] : memref<2x32xf32, #tpu.memory_space<vmem>>, vector<2x32xf32>
    %c0_1 = arith.constant 0 : index
    %c0_2 = arith.constant 0 : index
    %1 = vector.load %arg2[%c0_1, %c0_2] : memref<32x8xf32, #tpu.memory_space<vmem>>, vector<32x8xf32>
    %c0_3 = arith.constant 0 : index
    %c0_4 = arith.constant 0 : index
    %2 = vector.load %arg3[%c0_3, %c0_4] : memref<1x8xf32, #tpu.memory_space<vmem>>, vector<1x8xf32>
    %3 = vector.shape_cast %2 : vector<1x8xf32> to vector<1x8xf32>
    %4 = vector.broadcast %3 : vector<1x8xf32> to vector<2x8xf32>
    %5 = vector.extract_strided_slice %0 {offsets = [0, 0], sizes = [2, 1], strides = [1, 1]} : vector<2x32xf32> to vector<2x1xf32>
    %6 = vector.extract_strided_slice %1 {offsets = [0, 0], sizes = [1, 8], strides = [1, 1]} : vector<32x8xf32> to vector<1x8xf32>
    %7 = vector.broadcast %5 : vector<2x1xf32> to vector<2x8xf32>
    %8 = vector.broadcast %6 : vector<1x8xf32> to vector<2x8xf32>
    %9 = arith.mulf %7, %8 : vector<2x8xf32>
    %10 = arith.addf %4, %9 : vector<2x8xf32>
    %11 = vector.extract_strided_slice %0 {offsets = [0, 1], sizes = [2, 1], strides = [1, 1]} : vector<2x32xf32> to vector<2x1xf32>
    %12 = vector.extract_strided_slice %1 {offsets = [1, 0], sizes = [1, 8], strides = [1, 1]} : vector<32x8xf32> to vector<1x8xf32>
    %13 = vector.broadcast %11 : vector<2x1xf32> to vector<2x8xf32>
    %14 = vector.broadcast %12 : vector<1x8xf32> to vector<2x8xf32>
    %15 = arith.mulf %13, %14 : vector<2x8xf32>
    %16 = arith.addf %10, %15 : vector<2x8xf32>
    %17 = vector.extract_strided_slice %0 {offsets = [0, 2], sizes = [2, 1], strides = [1, 1]} : vector<2x32xf32> to vector<2x1xf32>
    %18 = vector.extract_strided_slice %1 {offsets = [2, 0], sizes = [1, 8], strides = [1, 1]} : vector<32x8xf32> to vector<1x8xf32>
    %19 = vector.broadcast %17 : vector<2x1xf32> to vector<2x8xf32>
    %20 = vector.broadcast %18 : vector<1x8xf32> to vector<2x8xf32>
    %21 = arith.mulf %19, %20 : vector<2x8xf32>
    %22 = arith.addf %16, %21 : vector<2x8xf32>
    %23 = vector.extract_strided_slice %0 {offsets = [0, 3], sizes = [2, 1], strides = [1, 1]} : vector<2x32xf32> to vector<2x1xf32>
    %24 = vector.extract_strided_slice %1 {offsets = [3, 0], sizes = [1, 8], strides = [1, 1]} : vector<32x8xf32> to vector<1x8xf32>
    %25 = vector.broadcast %23 : vector<2x1xf32> to vector<2x8xf32>
    %26 = vector.broadcast %24 : vector<1x8xf32> to vector<2x8xf32>
    %27 = arith.mulf %25, %26 : vector<2x8xf32>
    %28 = arith.addf %22, %27 : vector<2x8xf32>
    %29 = vector.extract_strided_slice %0 {offsets = [0, 4], sizes = [2, 1], strides = [1, 1]} : vector<2x32xf32> to vector<2x1xf32>
    %30 = vector.extract_strided_slice %1 {offsets = [4, 0], sizes = [1, 8], strides = [1, 1]} : vector<32x8xf32> to vector<1x8xf32>
    %31 = vector.broadcast %29 : vector<2x1xf32> to vector<2x8xf32>
    %32 = vector.broadcast %30 : vector<1x8xf32> to vector<2x8xf32>
    %33 = arith.mulf %31, %32 : vector<2x8xf32>
    %34 = arith.addf %28, %33 : vector<2x8xf32>
    %35 = vector.extract_strided_slice %0 {offsets = [0, 5], sizes = [2, 1], strides = [1, 1]} : vector<2x32xf32> to vector<2x1xf32>
    %36 = vector.extract_strided_slice %1 {offsets = [5, 0], sizes = [1, 8], strides = [1, 1]} : vector<32x8xf32> to vector<1x8xf32>
    %37 = vector.broadcast %35 : vector<2x1xf32> to vector<2x8xf32>
    %38 = vector.broadcast %36 : vector<1x8xf32> to vector<2x8xf32>
    %39 = arith.mulf %37, %38 : vector<2x8xf32>
    %40 = arith.addf %34, %39 : vector<2x8xf32>
    %41 = vector.extract_strided_slice %0 {offsets = [0, 6], sizes = [2, 1], strides = [1, 1]} : vector<2x32xf32> to vector<2x1xf32>
    %42 = vector.extract_strided_slice %1 {offsets = [6, 0], sizes = [1, 8], strides = [1, 1]} : vector<32x8xf32> to vector<1x8xf32>
    %43 = vector.broadcast %41 : vector<2x1xf32> to vector<2x8xf32>
    %44 = vector.broadcast %42 : vector<1x8xf32> to vector<2x8xf32>
    %45 = arith.mulf %43, %44 : vector<2x8xf32>
    %46 = arith.addf %40, %45 : vector<2x8xf32>
    %47 = vector.extract_strided_slice %0 {offsets = [0, 7], sizes = [2, 1], strides = [1, 1]} : vector<2x32xf32> to vector<2x1xf32>
    %48 = vector.extract_strided_slice %1 {offsets = [7, 0], sizes = [1, 8], strides = [1, 1]} : vector<32x8xf32> to vector<1x8xf32>
    %49 = vector.broadcast %47 : vector<2x1xf32> to vector<2x8xf32>
    %50 = vector.broadcast %48 : vector<1x8xf32> to vector<2x8xf32>
    %51 = arith.mulf %49, %50 : vector<2x8xf32>
    %52 = arith.addf %46, %51 : vector<2x8xf32>
    %53 = vector.extract_strided_slice %0 {offsets = [0, 8], sizes = [2, 1], strides = [1, 1]} : vector<2x32xf32> to vector<2x1xf32>
    %54 = vector.extract_strided_slice %1 {offsets = [8, 0], sizes = [1, 8], strides = [1, 1]} : vector<32x8xf32> to vector<1x8xf32>
    %55 = vector.broadcast %53 : vector<2x1xf32> to vector<2x8xf32>
    %56 = vector.broadcast %54 : vector<1x8xf32> to vector<2x8xf32>
    %57 = arith.mulf %55, %56 : vector<2x8xf32>
    %58 = arith.addf %52, %57 : vector<2x8xf32>
    %59 = vector.extract_strided_slice %0 {offsets = [0, 9], sizes = [2, 1], strides = [1, 1]} : vector<2x32xf32> to vector<2x1xf32>
    %60 = vector.extract_strided_slice %1 {offsets = [9, 0], sizes = [1, 8], strides = [1, 1]} : vector<32x8xf32> to vector<1x8xf32>
    %61 = vector.broadcast %59 : vector<2x1xf32> to vector<2x8xf32>
    %62 = vector.broadcast %60 : vector<1x8xf32> to vector<2x8xf32>
    %63 = arith.mulf %61, %62 : vector<2x8xf32>
    %64 = arith.addf %58, %63 : vector<2x8xf32>
    %65 = vector.extract_strided_slice %0 {offsets = [0, 10], sizes = [2, 1], strides = [1, 1]} : vector<2x32xf32> to vector<2x1xf32>
    %66 = vector.extract_strided_slice %1 {offsets = [10, 0], sizes = [1, 8], strides = [1, 1]} : vector<32x8xf32> to vector<1x8xf32>
    %67 = vector.broadcast %65 : vector<2x1xf32> to vector<2x8xf32>
    %68 = vector.broadcast %66 : vector<1x8xf32> to vector<2x8xf32>
    %69 = arith.mulf %67, %68 : vector<2x8xf32>
    %70 = arith.addf %64, %69 : vector<2x8xf32>
    %71 = vector.extract_strided_slice %0 {offsets = [0, 11], sizes = [2, 1], strides = [1, 1]} : vector<2x32xf32> to vector<2x1xf32>
    %72 = vector.extract_strided_slice %1 {offsets = [11, 0], sizes = [1, 8], strides = [1, 1]} : vector<32x8xf32> to vector<1x8xf32>
    %73 = vector.broadcast %71 : vector<2x1xf32> to vector<2x8xf32>
    %74 = vector.broadcast %72 : vector<1x8xf32> to vector<2x8xf32>
    %75 = arith.mulf %73, %74 : vector<2x8xf32>
    %76 = arith.addf %70, %75 : vector<2x8xf32>
    %77 = vector.extract_strided_slice %0 {offsets = [0, 12], sizes = [2, 1], strides = [1, 1]} : vector<2x32xf32> to vector<2x1xf32>
    %78 = vector.extract_strided_slice %1 {offsets = [12, 0], sizes = [1, 8], strides = [1, 1]} : vector<32x8xf32> to vector<1x8xf32>
    %79 = vector.broadcast %77 : vector<2x1xf32> to vector<2x8xf32>
    %80 = vector.broadcast %78 : vector<1x8xf32> to vector<2x8xf32>
    %81 = arith.mulf %79, %80 : vector<2x8xf32>
    %82 = arith.addf %76, %81 : vector<2x8xf32>
    %83 = vector.extract_strided_slice %0 {offsets = [0, 13], sizes = [2, 1], strides = [1, 1]} : vector<2x32xf32> to vector<2x1xf32>
    %84 = vector.extract_strided_slice %1 {offsets = [13, 0], sizes = [1, 8], strides = [1, 1]} : vector<32x8xf32> to vector<1x8xf32>
    %85 = vector.broadcast %83 : vector<2x1xf32> to vector<2x8xf32>
    %86 = vector.broadcast %84 : vector<1x8xf32> to vector<2x8xf32>
    %87 = arith.mulf %85, %86 : vector<2x8xf32>
    %88 = arith.addf %82, %87 : vector<2x8xf32>
    %89 = vector.extract_strided_slice %0 {offsets = [0, 14], sizes = [2, 1], strides = [1, 1]} : vector<2x32xf32> to vector<2x1xf32>
    %90 = vector.extract_strided_slice %1 {offsets = [14, 0], sizes = [1, 8], strides = [1, 1]} : vector<32x8xf32> to vector<1x8xf32>
    %91 = vector.broadcast %89 : vector<2x1xf32> to vector<2x8xf32>
    %92 = vector.broadcast %90 : vector<1x8xf32> to vector<2x8xf32>
    %93 = arith.mulf %91, %92 : vector<2x8xf32>
    %94 = arith.addf %88, %93 : vector<2x8xf32>
    %95 = vector.extract_strided_slice %0 {offsets = [0, 15], sizes = [2, 1], strides = [1, 1]} : vector<2x32xf32> to vector<2x1xf32>
    %96 = vector.extract_strided_slice %1 {offsets = [15, 0], sizes = [1, 8], strides = [1, 1]} : vector<32x8xf32> to vector<1x8xf32>
    %97 = vector.broadcast %95 : vector<2x1xf32> to vector<2x8xf32>
    %98 = vector.broadcast %96 : vector<1x8xf32> to vector<2x8xf32>
    %99 = arith.mulf %97, %98 : vector<2x8xf32>
    %100 = arith.addf %94, %99 : vector<2x8xf32>
    %101 = vector.extract_strided_slice %0 {offsets = [0, 16], sizes = [2, 1], strides = [1, 1]} : vector<2x32xf32> to vector<2x1xf32>
    %102 = vector.extract_strided_slice %1 {offsets = [16, 0], sizes = [1, 8], strides = [1, 1]} : vector<32x8xf32> to vector<1x8xf32>
    %103 = vector.broadcast %101 : vector<2x1xf32> to vector<2x8xf32>
    %104 = vector.broadcast %102 : vector<1x8xf32> to vector<2x8xf32>
    %105 = arith.mulf %103, %104 : vector<2x8xf32>
    %106 = arith.addf %100, %105 : vector<2x8xf32>
    %107 = vector.extract_strided_slice %0 {offsets = [0, 17], sizes = [2, 1], strides = [1, 1]} : vector<2x32xf32> to vector<2x1xf32>
    %108 = vector.extract_strided_slice %1 {offsets = [17, 0], sizes = [1, 8], strides = [1, 1]} : vector<32x8xf32> to vector<1x8xf32>
    %109 = vector.broadcast %107 : vector<2x1xf32> to vector<2x8xf32>
    %110 = vector.broadcast %108 : vector<1x8xf32> to vector<2x8xf32>
    %111 = arith.mulf %109, %110 : vector<2x8xf32>
    %112 = arith.addf %106, %111 : vector<2x8xf32>
    %113 = vector.extract_strided_slice %0 {offsets = [0, 18], sizes = [2, 1], strides = [1, 1]} : vector<2x32xf32> to vector<2x1xf32>
    %114 = vector.extract_strided_slice %1 {offsets = [18, 0], sizes = [1, 8], strides = [1, 1]} : vector<32x8xf32> to vector<1x8xf32>
    %115 = vector.broadcast %113 : vector<2x1xf32> to vector<2x8xf32>
    %116 = vector.broadcast %114 : vector<1x8xf32> to vector<2x8xf32>
    %117 = arith.mulf %115, %116 : vector<2x8xf32>
    %118 = arith.addf %112, %117 : vector<2x8xf32>
    %119 = vector.extract_strided_slice %0 {offsets = [0, 19], sizes = [2, 1], strides = [1, 1]} : vector<2x32xf32> to vector<2x1xf32>
    %120 = vector.extract_strided_slice %1 {offsets = [19, 0], sizes = [1, 8], strides = [1, 1]} : vector<32x8xf32> to vector<1x8xf32>
    %121 = vector.broadcast %119 : vector<2x1xf32> to vector<2x8xf32>
    %122 = vector.broadcast %120 : vector<1x8xf32> to vector<2x8xf32>
    %123 = arith.mulf %121, %122 : vector<2x8xf32>
    %124 = arith.addf %118, %123 : vector<2x8xf32>
    %125 = vector.extract_strided_slice %0 {offsets = [0, 20], sizes = [2, 1], strides = [1, 1]} : vector<2x32xf32> to vector<2x1xf32>
    %126 = vector.extract_strided_slice %1 {offsets = [20, 0], sizes = [1, 8], strides = [1, 1]} : vector<32x8xf32> to vector<1x8xf32>
    %127 = vector.broadcast %125 : vector<2x1xf32> to vector<2x8xf32>
    %128 = vector.broadcast %126 : vector<1x8xf32> to vector<2x8xf32>
    %129 = arith.mulf %127, %128 : vector<2x8xf32>
    %130 = arith.addf %124, %129 : vector<2x8xf32>
    %131 = vector.extract_strided_slice %0 {offsets = [0, 21], sizes = [2, 1], strides = [1, 1]} : vector<2x32xf32> to vector<2x1xf32>
    %132 = vector.extract_strided_slice %1 {offsets = [21, 0], sizes = [1, 8], strides = [1, 1]} : vector<32x8xf32> to vector<1x8xf32>
    %133 = vector.broadcast %131 : vector<2x1xf32> to vector<2x8xf32>
    %134 = vector.broadcast %132 : vector<1x8xf32> to vector<2x8xf32>
    %135 = arith.mulf %133, %134 : vector<2x8xf32>
    %136 = arith.addf %130, %135 : vector<2x8xf32>
    %137 = vector.extract_strided_slice %0 {offsets = [0, 22], sizes = [2, 1], strides = [1, 1]} : vector<2x32xf32> to vector<2x1xf32>
    %138 = vector.extract_strided_slice %1 {offsets = [22, 0], sizes = [1, 8], strides = [1, 1]} : vector<32x8xf32> to vector<1x8xf32>
    %139 = vector.broadcast %137 : vector<2x1xf32> to vector<2x8xf32>
    %140 = vector.broadcast %138 : vector<1x8xf32> to vector<2x8xf32>
    %141 = arith.mulf %139, %140 : vector<2x8xf32>
    %142 = arith.addf %136, %141 : vector<2x8xf32>
    %143 = vector.extract_strided_slice %0 {offsets = [0, 23], sizes = [2, 1], strides = [1, 1]} : vector<2x32xf32> to vector<2x1xf32>
    %144 = vector.extract_strided_slice %1 {offsets = [23, 0], sizes = [1, 8], strides = [1, 1]} : vector<32x8xf32> to vector<1x8xf32>
    %145 = vector.broadcast %143 : vector<2x1xf32> to vector<2x8xf32>
    %146 = vector.broadcast %144 : vector<1x8xf32> to vector<2x8xf32>
    %147 = arith.mulf %145, %146 : vector<2x8xf32>
    %148 = arith.addf %142, %147 : vector<2x8xf32>
    %149 = vector.extract_strided_slice %0 {offsets = [0, 24], sizes = [2, 1], strides = [1, 1]} : vector<2x32xf32> to vector<2x1xf32>
    %150 = vector.extract_strided_slice %1 {offsets = [24, 0], sizes = [1, 8], strides = [1, 1]} : vector<32x8xf32> to vector<1x8xf32>
    %151 = vector.broadcast %149 : vector<2x1xf32> to vector<2x8xf32>
    %152 = vector.broadcast %150 : vector<1x8xf32> to vector<2x8xf32>
    %153 = arith.mulf %151, %152 : vector<2x8xf32>
    %154 = arith.addf %148, %153 : vector<2x8xf32>
    %155 = vector.extract_strided_slice %0 {offsets = [0, 25], sizes = [2, 1], strides = [1, 1]} : vector<2x32xf32> to vector<2x1xf32>
    %156 = vector.extract_strided_slice %1 {offsets = [25, 0], sizes = [1, 8], strides = [1, 1]} : vector<32x8xf32> to vector<1x8xf32>
    %157 = vector.broadcast %155 : vector<2x1xf32> to vector<2x8xf32>
    %158 = vector.broadcast %156 : vector<1x8xf32> to vector<2x8xf32>
    %159 = arith.mulf %157, %158 : vector<2x8xf32>
    %160 = arith.addf %154, %159 : vector<2x8xf32>
    %161 = vector.extract_strided_slice %0 {offsets = [0, 26], sizes = [2, 1], strides = [1, 1]} : vector<2x32xf32> to vector<2x1xf32>
    %162 = vector.extract_strided_slice %1 {offsets = [26, 0], sizes = [1, 8], strides = [1, 1]} : vector<32x8xf32> to vector<1x8xf32>
    %163 = vector.broadcast %161 : vector<2x1xf32> to vector<2x8xf32>
    %164 = vector.broadcast %162 : vector<1x8xf32> to vector<2x8xf32>
    %165 = arith.mulf %163, %164 : vector<2x8xf32>
    %166 = arith.addf %160, %165 : vector<2x8xf32>
    %167 = vector.extract_strided_slice %0 {offsets = [0, 27], sizes = [2, 1], strides = [1, 1]} : vector<2x32xf32> to vector<2x1xf32>
    %168 = vector.extract_strided_slice %1 {offsets = [27, 0], sizes = [1, 8], strides = [1, 1]} : vector<32x8xf32> to vector<1x8xf32>
    %169 = vector.broadcast %167 : vector<2x1xf32> to vector<2x8xf32>
    %170 = vector.broadcast %168 : vector<1x8xf32> to vector<2x8xf32>
    %171 = arith.mulf %169, %170 : vector<2x8xf32>
    %172 = arith.addf %166, %171 : vector<2x8xf32>
    %173 = vector.extract_strided_slice %0 {offsets = [0, 28], sizes = [2, 1], strides = [1, 1]} : vector<2x32xf32> to vector<2x1xf32>
    %174 = vector.extract_strided_slice %1 {offsets = [28, 0], sizes = [1, 8], strides = [1, 1]} : vector<32x8xf32> to vector<1x8xf32>
    %175 = vector.broadcast %173 : vector<2x1xf32> to vector<2x8xf32>
    %176 = vector.broadcast %174 : vector<1x8xf32> to vector<2x8xf32>
    %177 = arith.mulf %175, %176 : vector<2x8xf32>
    %178 = arith.addf %172, %177 : vector<2x8xf32>
    %179 = vector.extract_strided_slice %0 {offsets = [0, 29], sizes = [2, 1], strides = [1, 1]} : vector<2x32xf32> to vector<2x1xf32>
    %180 = vector.extract_strided_slice %1 {offsets = [29, 0], sizes = [1, 8], strides = [1, 1]} : vector<32x8xf32> to vector<1x8xf32>
    %181 = vector.broadcast %179 : vector<2x1xf32> to vector<2x8xf32>
    %182 = vector.broadcast %180 : vector<1x8xf32> to vector<2x8xf32>
    %183 = arith.mulf %181, %182 : vector<2x8xf32>
    %184 = arith.addf %178, %183 : vector<2x8xf32>
    %185 = vector.extract_strided_slice %0 {offsets = [0, 30], sizes = [2, 1], strides = [1, 1]} : vector<2x32xf32> to vector<2x1xf32>
    %186 = vector.extract_strided_slice %1 {offsets = [30, 0], sizes = [1, 8], strides = [1, 1]} : vector<32x8xf32> to vector<1x8xf32>
    %187 = vector.broadcast %185 : vector<2x1xf32> to vector<2x8xf32>
    %188 = vector.broadcast %186 : vector<1x8xf32> to vector<2x8xf32>
    %189 = arith.mulf %187, %188 : vector<2x8xf32>
    %190 = arith.addf %184, %189 : vector<2x8xf32>
    %191 = vector.extract_strided_slice %0 {offsets = [0, 31], sizes = [2, 1], strides = [1, 1]} : vector<2x32xf32> to vector<2x1xf32>
    %192 = vector.extract_strided_slice %1 {offsets = [31, 0], sizes = [1, 8], strides = [1, 1]} : vector<32x8xf32> to vector<1x8xf32>
    %193 = vector.broadcast %191 : vector<2x1xf32> to vector<2x8xf32>
    %194 = vector.broadcast %192 : vector<1x8xf32> to vector<2x8xf32>
    %195 = arith.mulf %193, %194 : vector<2x8xf32>
    %196 = arith.addf %190, %195 : vector<2x8xf32>
    %c0_5 = arith.constant 0 : index
    %c0_6 = arith.constant 0 : index
    %197 = vector.load %arg5[%c0_5, %c0_6] : memref<2x8xf32, #tpu.memory_space<vmem>>, vector<2x8xf32>
    tpu.vector_store %arg5[%c0_5, %c0_6], %196 {strides = array<i32>} : memref<2x8xf32, #tpu.memory_space<vmem>>, vector<2x8xf32>,
    %198 = vector.extract_strided_slice %196 {offsets = [0, 0], sizes = [2, 1], strides = [1, 1]} : vector<2x8xf32> to vector<2x1xf32>
    %c0_7 = arith.constant 0 : index
    %c0_8 = arith.constant 0 : index
    %199 = vector.load %arg4[%c0_7, %c0_8] : memref<8x2304xf32, #tpu.memory_space<vmem>>, vector<1x2304xf32>
    %200 = vector.broadcast %198 : vector<2x1xf32> to vector<2x2304xf32>
    %201 = vector.broadcast %199 : vector<1x2304xf32> to vector<2x2304xf32>
    %202 = arith.mulf %200, %201 : vector<2x2304xf32>
    %c0_9 = arith.constant 0 : index
    %c0_10 = arith.constant 0 : index
    %203 = vector.load %arg6[%c0_9, %c0_10] : memref<2x2304xf32, #tpu.memory_space<vmem>>, vector<2x2304xf32>
    tpu.vector_store %arg6[%c0_9, %c0_10], %202 {strides = array<i32>} : memref<2x2304xf32, #tpu.memory_space<vmem>>, vector<2x2304xf32>,
    %c0_11 = arith.constant 0 : index
    %c0_12 = arith.constant 0 : index
    %204 = vector.load %arg6[%c0_11, %c0_12] : memref<2x2304xf32, #tpu.memory_space<vmem>>, vector<2x2304xf32>
    %205 = vector.extract_strided_slice %196 {offsets = [0, 1], sizes = [2, 1], strides = [1, 1]} : vector<2x8xf32> to vector<2x1xf32>
    %c1 = arith.constant 1 : index
    %c0_13 = arith.constant 0 : index
    %206 = vector.load %arg4[%c1, %c0_13] : memref<8x2304xf32, #tpu.memory_space<vmem>>, vector<1x2304xf32>
    %207 = vector.broadcast %205 : vector<2x1xf32> to vector<2x2304xf32>
    %208 = vector.broadcast %206 : vector<1x2304xf32> to vector<2x2304xf32>
    %209 = arith.mulf %207, %208 : vector<2x2304xf32>
    %210 = arith.addf %204, %209 : vector<2x2304xf32>
    %c0_14 = arith.constant 0 : index
    %c0_15 = arith.constant 0 : index
    %211 = vector.load %arg6[%c0_14, %c0_15] : memref<2x2304xf32, #tpu.memory_space<vmem>>, vector<2x2304xf32>
    tpu.vector_store %arg6[%c0_14, %c0_15], %210 {strides = array<i32>} : memref<2x2304xf32, #tpu.memory_space<vmem>>, vector<2x2304xf32>,
    %c0_16 = arith.constant 0 : index
    %c0_17 = arith.constant 0 : index
    %212 = vector.load %arg6[%c0_16, %c0_17] : memref<2x2304xf32, #tpu.memory_space<vmem>>, vector<2x2304xf32>
    %213 = vector.extract_strided_slice %196 {offsets = [0, 2], sizes = [2, 1], strides = [1, 1]} : vector<2x8xf32> to vector<2x1xf32>
    %c2 = arith.constant 2 : index
    %c0_18 = arith.constant 0 : index
    %214 = vector.load %arg4[%c2, %c0_18] : memref<8x2304xf32, #tpu.memory_space<vmem>>, vector<1x2304xf32>
    %215 = vector.broadcast %213 : vector<2x1xf32> to vector<2x2304xf32>
    %216 = vector.broadcast %214 : vector<1x2304xf32> to vector<2x2304xf32>
    %217 = arith.mulf %215, %216 : vector<2x2304xf32>
    %218 = arith.addf %212, %217 : vector<2x2304xf32>
    %c0_19 = arith.constant 0 : index
    %c0_20 = arith.constant 0 : index
    %219 = vector.load %arg6[%c0_19, %c0_20] : memref<2x2304xf32, #tpu.memory_space<vmem>>, vector<2x2304xf32>
    tpu.vector_store %arg6[%c0_19, %c0_20], %218 {strides = array<i32>} : memref<2x2304xf32, #tpu.memory_space<vmem>>, vector<2x2304xf32>,
    %c0_21 = arith.constant 0 : index
    %c0_22 = arith.constant 0 : index
    %220 = vector.load %arg6[%c0_21, %c0_22] : memref<2x2304xf32, #tpu.memory_space<vmem>>, vector<2x2304xf32>
    %221 = vector.extract_strided_slice %196 {offsets = [0, 3], sizes = [2, 1], strides = [1, 1]} : vector<2x8xf32> to vector<2x1xf32>
    %c3 = arith.constant 3 : index
    %c0_23 = arith.constant 0 : index
    %222 = vector.load %arg4[%c3, %c0_23] : memref<8x2304xf32, #tpu.memory_space<vmem>>, vector<1x2304xf32>
    %223 = vector.broadcast %221 : vector<2x1xf32> to vector<2x2304xf32>
    %224 = vector.broadcast %222 : vector<1x2304xf32> to vector<2x2304xf32>
    %225 = arith.mulf %223, %224 : vector<2x2304xf32>
    %226 = arith.addf %220, %225 : vector<2x2304xf32>
    %c0_24 = arith.constant 0 : index
    %c0_25 = arith.constant 0 : index
    %227 = vector.load %arg6[%c0_24, %c0_25] : memref<2x2304xf32, #tpu.memory_space<vmem>>, vector<2x2304xf32>
    tpu.vector_store %arg6[%c0_24, %c0_25], %226 {strides = array<i32>} : memref<2x2304xf32, #tpu.memory_space<vmem>>, vector<2x2304xf32>,
    %c0_26 = arith.constant 0 : index
    %c0_27 = arith.constant 0 : index
    %228 = vector.load %arg6[%c0_26, %c0_27] : memref<2x2304xf32, #tpu.memory_space<vmem>>, vector<2x2304xf32>
    %229 = vector.extract_strided_slice %196 {offsets = [0, 4], sizes = [2, 1], strides = [1, 1]} : vector<2x8xf32> to vector<2x1xf32>
    %c4 = arith.constant 4 : index
    %c0_28 = arith.constant 0 : index
    %230 = vector.load %arg4[%c4, %c0_28] : memref<8x2304xf32, #tpu.memory_space<vmem>>, vector<1x2304xf32>
    %231 = vector.broadcast %229 : vector<2x1xf32> to vector<2x2304xf32>
    %232 = vector.broadcast %230 : vector<1x2304xf32> to vector<2x2304xf32>
    %233 = arith.mulf %231, %232 : vector<2x2304xf32>
    %234 = arith.addf %228, %233 : vector<2x2304xf32>
    %c0_29 = arith.constant 0 : index
    %c0_30 = arith.constant 0 : index
    %235 = vector.load %arg6[%c0_29, %c0_30] : memref<2x2304xf32, #tpu.memory_space<vmem>>, vector<2x2304xf32>
    tpu.vector_store %arg6[%c0_29, %c0_30], %234 {strides = array<i32>} : memref<2x2304xf32, #tpu.memory_space<vmem>>, vector<2x2304xf32>,
    %c0_31 = arith.constant 0 : index
    %c0_32 = arith.constant 0 : index
    %236 = vector.load %arg6[%c0_31, %c0_32] : memref<2x2304xf32, #tpu.memory_space<vmem>>, vector<2x2304xf32>
    %237 = vector.extract_strided_slice %196 {offsets = [0, 5], sizes = [2, 1], strides = [1, 1]} : vector<2x8xf32> to vector<2x1xf32>
    %c5 = arith.constant 5 : index
    %c0_33 = arith.constant 0 : index
    %238 = vector.load %arg4[%c5, %c0_33] : memref<8x2304xf32, #tpu.memory_space<vmem>>, vector<1x2304xf32>
    %239 = vector.broadcast %237 : vector<2x1xf32> to vector<2x2304xf32>
    %240 = vector.broadcast %238 : vector<1x2304xf32> to vector<2x2304xf32>
    %241 = arith.mulf %239, %240 : vector<2x2304xf32>
    %242 = arith.addf %236, %241 : vector<2x2304xf32>
    %c0_34 = arith.constant 0 : index
    %c0_35 = arith.constant 0 : index
    %243 = vector.load %arg6[%c0_34, %c0_35] : memref<2x2304xf32, #tpu.memory_space<vmem>>, vector<2x2304xf32>
    tpu.vector_store %arg6[%c0_34, %c0_35], %242 {strides = array<i32>} : memref<2x2304xf32, #tpu.memory_space<vmem>>, vector<2x2304xf32>,
    %c0_36 = arith.constant 0 : index
    %c0_37 = arith.constant 0 : index
    %244 = vector.load %arg6[%c0_36, %c0_37] : memref<2x2304xf32, #tpu.memory_space<vmem>>, vector<2x2304xf32>
    %245 = vector.extract_strided_slice %196 {offsets = [0, 6], sizes = [2, 1], strides = [1, 1]} : vector<2x8xf32> to vector<2x1xf32>
    %c6 = arith.constant 6 : index
    %c0_38 = arith.constant 0 : index
    %246 = vector.load %arg4[%c6, %c0_38] : memref<8x2304xf32, #tpu.memory_space<vmem>>, vector<1x2304xf32>
    %247 = vector.broadcast %245 : vector<2x1xf32> to vector<2x2304xf32>
    %248 = vector.broadcast %246 : vector<1x2304xf32> to vector<2x2304xf32>
    %249 = arith.mulf %247, %248 : vector<2x2304xf32>
    %250 = arith.addf %244, %249 : vector<2x2304xf32>
    %c0_39 = arith.constant 0 : index
    %c0_40 = arith.constant 0 : index
    %251 = vector.load %arg6[%c0_39, %c0_40] : memref<2x2304xf32, #tpu.memory_space<vmem>>, vector<2x2304xf32>
    tpu.vector_store %arg6[%c0_39, %c0_40], %250 {strides = array<i32>} : memref<2x2304xf32, #tpu.memory_space<vmem>>, vector<2x2304xf32>,
    %c0_41 = arith.constant 0 : index
    %c0_42 = arith.constant 0 : index
    %252 = vector.load %arg6[%c0_41, %c0_42] : memref<2x2304xf32, #tpu.memory_space<vmem>>, vector<2x2304xf32>
    %253 = vector.extract_strided_slice %196 {offsets = [0, 7], sizes = [2, 1], strides = [1, 1]} : vector<2x8xf32> to vector<2x1xf32>
    %c7 = arith.constant 7 : index
    %c0_43 = arith.constant 0 : index
    %254 = vector.load %arg4[%c7, %c0_43] : memref<8x2304xf32, #tpu.memory_space<vmem>>, vector<1x2304xf32>
    %255 = vector.broadcast %253 : vector<2x1xf32> to vector<2x2304xf32>
    %256 = vector.broadcast %254 : vector<1x2304xf32> to vector<2x2304xf32>
    %257 = arith.mulf %255, %256 : vector<2x2304xf32>
    %258 = arith.addf %252, %257 : vector<2x2304xf32>
    %c0_44 = arith.constant 0 : index
    %c0_45 = arith.constant 0 : index
    %259 = vector.load %arg6[%c0_44, %c0_45] : memref<2x2304xf32, #tpu.memory_space<vmem>>, vector<2x2304xf32>
    tpu.vector_store %arg6[%c0_44, %c0_45], %258 {strides = array<i32>} : memref<2x2304xf32, #tpu.memory_space<vmem>>, vector<2x2304xf32>,
    return
  }
  func.func @transform_0(%arg0: i32) -> (i32, i32) {
    %c0_i32 = arith.constant 0 : i32
    %c0_i32_0 = arith.constant 0 : i32
    %c0_i32_1 = arith.constant 0 : i32
    return %c0_i32, %c0_i32_0 : i32, i32
  }
  func.func @transform_1(%arg0: i32) -> (i32, i32) {
    %c0_i32 = arith.constant 0 : i32
    %c0_i32_0 = arith.constant 0 : i32
    %c0_i32_1 = arith.constant 0 : i32
    return %c0_i32, %c0_i32_0 : i32, i32
  }
  func.func @transform_2(%arg0: i32) -> (i32, i32) {
    %c0_i32 = arith.constant 0 : i32
    %c0_i32_0 = arith.constant 0 : i32
    %c0_i32_1 = arith.constant 0 : i32
    return %c0_i32, %c0_i32_0 : i32, i32
  }
  func.func @transform_3(%arg0: i32) -> (i32, i32) {
    %c0_i32 = arith.constant 0 : i32
    %c0_i32_0 = arith.constant 0 : i32
    return %c0_i32, %arg0 : i32, i32
  }
  func.func @transform_4(%arg0: i32) -> (i32, i32) {
    %c0_i32 = arith.constant 0 : i32
    %c0_i32_0 = arith.constant 0 : i32
    %c0_i32_1 = arith.constant 0 : i32
    return %c0_i32, %c0_i32_0 : i32, i32
  }
  func.func @transform_5(%arg0: i32) -> (i32, i32) {
    %c0_i32 = arith.constant 0 : i32
    %c0_i32_0 = arith.constant 0 : i32
    return %c0_i32, %arg0 : i32, i32
  }
}

</mosaic_0001>

<llo_original>
// kernel: lut_generator_forward.1
$region0: #{lut_generator_forward.1}
  #allocation0 [shape = 'u32[]', space=smem, size = 0x4, offset = 0x4, fixed_abs, tag = 'smem constant byte address 0x4 - core index']
  #allocation1 [shape = 'u32[144,128]{1,0:T(1,128)}', space=vmem, size = 0x12000, scoped, tag = 'internal scratch']
  %s0 = inlined_call_operand.vmem [shape: f32[2,32], index: 0, kind: input, shape index: {}]
  %s1 = inlined_call_operand.vmem [shape: f32[32,8], index: 1, kind: input, shape index: {}]
  %s2 = inlined_call_operand.vmem [shape: f32[1,8], index: 2, kind: input, shape index: {}]
  %s3 = inlined_call_operand.hbm [shape: f32[8,2304], index: 3, kind: input, shape index: {}]
  %s4 = inlined_call_operand.hbm [shape: f32[2,8], index: 4, kind: output, shape index: {0}]
  %s5 = inlined_call_operand.vmem [shape: f32[2,2187], index: 5, kind: output, shape index: {1}]
  %6 = xla_tuple %s4, %s5
  %s7 = sld [smem:[#allocation0]]
  $region38: #{lut_generator_forward.1} parent=0
    _
  %s9 = ssub.s32 1, %s7
  %s10 = scalar_select 0, %s9, %s7
  $region1: #{lut_generator_forward.1} parent=0
    #allocation2 [shape = 'u8[73728]{0}', space=vmem, size = 0x12000, scoped, tag = 'input window, operand 3, single buffered']
    #allocation3 [shape = 's32[1]{0}', space=sflag, size = 0x4, scoped, tag = 'scoped memory for lut_generator_forward.1']
    #allocation4 [shape = 's32[1]{0}', space=sflag, size = 0x4, scoped, tag = 'scoped memory for lut_generator_forward.1']
    #allocation5 [shape = 'u8[1024]{0}', space=vmem, size = 0x400, scoped, tag = 'output window, operand 0, single buffered']
    %11 = vsyncpa [#allocation3], 0
    %12 = vsyncpa [#allocation4], 0
    // Predicated region
    $region2: #{lut_generator_forward.1} parent=1 // pred_check
      _
    $region3: #{lut_generator_forward.1} parent=1 // pred_check_branch
      %14 = sbr.rel (0) target = $region5
    $region4: #{lut_generator_forward.1} parent=1 // pred_region
      _
    $region5: #{lut_generator_forward.1} parent=1 // pred_fallthru
      _
    // Predicated region
    $region6: #{lut_generator_forward.1} parent=1 // pred_check
      _
    $region7: #{lut_generator_forward.1} parent=1 // pred_check_branch
      %16 = sbr.rel (0) target = $region9
    $region8: #{lut_generator_forward.1} parent=1 // pred_region
      _
    $region9: #{lut_generator_forward.1} parent=1 // pred_fallthru
      _
    // Predicated region
    $region10: #{lut_generator_forward.1} parent=1 // pred_check
      _
    $region11: #{lut_generator_forward.1} parent=1 // pred_check_branch
      %18 = sbr.rel (0) target = $region13
    $region12: #{lut_generator_forward.1} parent=1 // pred_region
      _
    $region13: #{lut_generator_forward.1} parent=1 // pred_fallthru
      _
    // Predicated region
    $region14: #{lut_generator_forward.1} parent=1 // pred_check
      _
    $region15: #{lut_generator_forward.1} parent=1 // pred_check_branch
      %20 = sbr.rel (0) target = $region17
    $region16: #{lut_generator_forward.1} parent=1 // pred_region
      %s22 = ssub.s32 2304, 2304
      %23 = vsyncadd [#allocation3], %s22
      %s25 = sshll.u32 [#allocation2], 4
      %s26 = int_to_ptr.vmem [resolvable:$true] %s25
      %28 = dma.hbm_to_vmem [thread:$0]  %s3, 2304, %s26, [#allocation3]
    $region17: #{lut_generator_forward.1} parent=1 // pred_fallthru
      _
    // Predicated region
    $region18: #{lut_generator_forward.1} parent=1 // pred_check
      _
    $region19: #{lut_generator_forward.1} parent=1 // pred_check_branch
      %30 = sbr.rel (0) target = $region21
    $region20: #{lut_generator_forward.1} parent=1 // pred_region
      %31 = dma.done [#allocation3], 2304
    $region21: #{lut_generator_forward.1} parent=1 // pred_fallthru
      _
    %v32 = vld [vmem:[%s0] sm:$0x3]
    %v33 = vld [vmem:[%s1] sm:$0xff]
    %v34 = vld [vmem:[%s1 + $0x8] sm:$0xff]
    %v35 = vld [vmem:[%s1 + $0x10] sm:$0xff]
    %v36 = vld [vmem:[%s1 + $0x18] sm:$0xff]
    %v37 = vld [vmem:[%s2] sm:$0x1]
    %v39 = vlaneseq
    %v40 = vshrl.u32 %v39, 7
    %v41 = vsub.s32 0, %v40
    %v42 = vrot.slane %v37, %v41
    %45 = vset.pattern.permute.xlu0 0
    %46 = vperm.xlu0 %45, %v32
    %v47 = vpop.permute.xlu0 %46
    %v49 = vlaneseq
    %v50 = vshrl.u32 %v49, 7
    %v51 = vsub.s32 0, %v50
    %v52 = vrot.slane %v33, %v51
    %v53 = vmul.f32 %v47, %v52
    %v54 = vadd.f32 %v42, %v53
    %55 = vset.pattern.permute.xlu0 1
    %56 = vperm.xlu0 %55, %v32
    %v57 = vpop.permute.xlu0 %56
    %v59 = vlaneseq
    %v60 = vshrl.u32 %v59, 7
    %v61 = vsub.s32 1, %v60
    %v62 = vrot.slane %v33, %v61
    %v63 = vmul.f32 %v57, %v62
    %v64 = vadd.f32 %v54, %v63
    %65 = vset.pattern.permute.xlu0 2
    %66 = vperm.xlu0 %65, %v32
    %v67 = vpop.permute.xlu0 %66
    %v69 = vlaneseq
    %v70 = vshrl.u32 %v69, 7
    %v71 = vsub.s32 2, %v70
    %v72 = vrot.slane %v33, %v71
    %v73 = vmul.f32 %v67, %v72
    %v74 = vadd.f32 %v64, %v73
    %75 = vset.pattern.permute.xlu0 3
    %76 = vperm.xlu0 %75, %v32
    %v77 = vpop.permute.xlu0 %76
    %v79 = vlaneseq
    %v80 = vshrl.u32 %v79, 7
    %v81 = vsub.s32 3, %v80
    %v82 = vrot.slane %v33, %v81
    %v83 = vmul.f32 %v77, %v82
    %v84 = vadd.f32 %v74, %v83
    %85 = vset.pattern.permute.xlu0 4
    %86 = vperm.xlu0 %85, %v32
    %v87 = vpop.permute.xlu0 %86
    %v89 = vlaneseq
    %v90 = vshrl.u32 %v89, 7
    %v91 = vsub.s32 4, %v90
    %v92 = vrot.slane %v33, %v91
    %v93 = vmul.f32 %v87, %v92
    %v94 = vadd.f32 %v84, %v93
    %95 = vset.pattern.permute.xlu0 5
    %96 = vperm.xlu0 %95, %v32
    %v97 = vpop.permute.xlu0 %96
    %v99 = vlaneseq
    %v100 = vshrl.u32 %v99, 7
    %v101 = vsub.s32 5, %v100
    %v102 = vrot.slane %v33, %v101
    %v103 = vmul.f32 %v97, %v102
    %v104 = vadd.f32 %v94, %v103
    %105 = vset.pattern.permute.xlu0 6
    %106 = vperm.xlu0 %105, %v32
    %v107 = vpop.permute.xlu0 %106
    %v109 = vlaneseq
    %v110 = vshrl.u32 %v109, 7
    %v111 = vsub.s32 6, %v110
    %v112 = vrot.slane %v33, %v111
    %v113 = vmul.f32 %v107, %v112
    %v114 = vadd.f32 %v104, %v113
    %115 = vset.pattern.permute.xlu0 7
    %116 = vperm.xlu0 %115, %v32
    %v117 = vpop.permute.xlu0 %116
    %v119 = vlaneseq
    %v120 = vshrl.u32 %v119, 7
    %v121 = vsub.s32 7, %v120
    %v122 = vrot.slane %v33, %v121
    %v123 = vmul.f32 %v117, %v122
    %v124 = vadd.f32 %v114, %v123
    %125 = vset.pattern.permute.xlu0 8
    %126 = vperm.xlu0 %125, %v32
    %v127 = vpop.permute.xlu0 %126
    %v129 = vlaneseq
    %v130 = vshrl.u32 %v129, 7
    %v131 = vsub.s32 0, %v130
    %v132 = vrot.slane %v34, %v131
    %v133 = vmul.f32 %v127, %v132
    %v134 = vadd.f32 %v124, %v133
    %135 = vset.pattern.permute.xlu0 9
    %136 = vperm.xlu0 %135, %v32
    %v137 = vpop.permute.xlu0 %136
    %v139 = vlaneseq
    %v140 = vshrl.u32 %v139, 7
    %v141 = vsub.s32 1, %v140
    %v142 = vrot.slane %v34, %v141
    %v143 = vmul.f32 %v137, %v142
    %v144 = vadd.f32 %v134, %v143
    %145 = vset.pattern.permute.xlu0 10
    %146 = vperm.xlu0 %145, %v32
    %v147 = vpop.permute.xlu0 %146
    %v149 = vlaneseq
    %v150 = vshrl.u32 %v149, 7
    %v151 = vsub.s32 2, %v150
    %v152 = vrot.slane %v34, %v151
    %v153 = vmul.f32 %v147, %v152
    %v154 = vadd.f32 %v144, %v153
    %155 = vset.pattern.permute.xlu0 11
    %156 = vperm.xlu0 %155, %v32
    %v157 = vpop.permute.xlu0 %156
    %v159 = vlaneseq
    %v160 = vshrl.u32 %v159, 7
    %v161 = vsub.s32 3, %v160
    %v162 = vrot.slane %v34, %v161
    %v163 = vmul.f32 %v157, %v162
    %v164 = vadd.f32 %v154, %v163
    %165 = vset.pattern.permute.xlu0 12
    %166 = vperm.xlu0 %165, %v32
    %v167 = vpop.permute.xlu0 %166
    %v169 = vlaneseq
    %v170 = vshrl.u32 %v169, 7
    %v171 = vsub.s32 4, %v170
    %v172 = vrot.slane %v34, %v171
    %v173 = vmul.f32 %v167, %v172
    %v174 = vadd.f32 %v164, %v173
    %175 = vset.pattern.permute.xlu0 13
    %176 = vperm.xlu0 %175, %v32
    %v177 = vpop.permute.xlu0 %176
    %v179 = vlaneseq
    %v180 = vshrl.u32 %v179, 7
    %v181 = vsub.s32 5, %v180
    %v182 = vrot.slane %v34, %v181
    %v183 = vmul.f32 %v177, %v182
    %v184 = vadd.f32 %v174, %v183
    %185 = vset.pattern.permute.xlu0 14
    %186 = vperm.xlu0 %185, %v32
    %v187 = vpop.permute.xlu0 %186
    %v189 = vlaneseq
    %v190 = vshrl.u32 %v189, 7
    %v191 = vsub.s32 6, %v190
    %v192 = vrot.slane %v34, %v191
    %v193 = vmul.f32 %v187, %v192
    %v194 = vadd.f32 %v184, %v193
    %195 = vset.pattern.permute.xlu0 15
    %196 = vperm.xlu0 %195, %v32
    %v197 = vpop.permute.xlu0 %196
    %v199 = vlaneseq
    %v200 = vshrl.u32 %v199, 7
    %v201 = vsub.s32 7, %v200
    %v202 = vrot.slane %v34, %v201
    %v203 = vmul.f32 %v197, %v202
    %v204 = vadd.f32 %v194, %v203
    %205 = vset.pattern.permute.xlu0 16
    %206 = vperm.xlu0 %205, %v32
    %v207 = vpop.permute.xlu0 %206
    %v209 = vlaneseq
    %v210 = vshrl.u32 %v209, 7
    %v211 = vsub.s32 0, %v210
    %v212 = vrot.slane %v35, %v211
    %v213 = vmul.f32 %v207, %v212
    %v214 = vadd.f32 %v204, %v213
    %215 = vset.pattern.permute.xlu0 17
    %216 = vperm.xlu0 %215, %v32
    %v217 = vpop.permute.xlu0 %216
    %v219 = vlaneseq
    %v220 = vshrl.u32 %v219, 7
    %v221 = vsub.s32 1, %v220
    %v222 = vrot.slane %v35, %v221
    %v223 = vmul.f32 %v217, %v222
    %v224 = vadd.f32 %v214, %v223
    %225 = vset.pattern.permute.xlu0 18
    %226 = vperm.xlu0 %225, %v32
    %v227 = vpop.permute.xlu0 %226
    %v229 = vlaneseq
    %v230 = vshrl.u32 %v229, 7
    %v231 = vsub.s32 2, %v230
    %v232 = vrot.slane %v35, %v231
    %v233 = vmul.f32 %v227, %v232
    %v234 = vadd.f32 %v224, %v233
    %235 = vset.pattern.permute.xlu0 19
    %236 = vperm.xlu0 %235, %v32
    %v237 = vpop.permute.xlu0 %236
    %v239 = vlaneseq
    %v240 = vshrl.u32 %v239, 7
    %v241 = vsub.s32 3, %v240
    %v242 = vrot.slane %v35, %v241
    %v243 = vmul.f32 %v237, %v242
    %v244 = vadd.f32 %v234, %v243
    %245 = vset.pattern.permute.xlu0 20
    %246 = vperm.xlu0 %245, %v32
    %v247 = vpop.permute.xlu0 %246
    %v249 = vlaneseq
    %v250 = vshrl.u32 %v249, 7
    %v251 = vsub.s32 4, %v250
    %v252 = vrot.slane %v35, %v251
    %v253 = vmul.f32 %v247, %v252
    %v254 = vadd.f32 %v244, %v253
    %255 = vset.pattern.permute.xlu0 21
    %256 = vperm.xlu0 %255, %v32
    %v257 = vpop.permute.xlu0 %256
    %v259 = vlaneseq
    %v260 = vshrl.u32 %v259, 7
    %v261 = vsub.s32 5, %v260
    %v262 = vrot.slane %v35, %v261
    %v263 = vmul.f32 %v257, %v262
    %v264 = vadd.f32 %v254, %v263
    %265 = vset.pattern.permute.xlu0 22
    %266 = vperm.xlu0 %265, %v32
    %v267 = vpop.permute.xlu0 %266
    %v269 = vlaneseq
    %v270 = vshrl.u32 %v269, 7
    %v271 = vsub.s32 6, %v270
    %v272 = vrot.slane %v35, %v271
    %v273 = vmul.f32 %v267, %v272
    %v274 = vadd.f32 %v264, %v273
    %275 = vset.pattern.permute.xlu0 23
    %276 = vperm.xlu0 %275, %v32
    %v277 = vpop.permute.xlu0 %276
    %v279 = vlaneseq
    %v280 = vshrl.u32 %v279, 7
    %v281 = vsub.s32 7, %v280
    %v282 = vrot.slane %v35, %v281
    %v283 = vmul.f32 %v277, %v282
    %v284 = vadd.f32 %v274, %v283
    %285 = vset.pattern.permute.xlu0 24
    %286 = vperm.xlu0 %285, %v32
    %v287 = vpop.permute.xlu0 %286
    %v289 = vlaneseq
    %v290 = vshrl.u32 %v289, 7
    %v291 = vsub.s32 0, %v290
    %v292 = vrot.slane %v36, %v291
    %v293 = vmul.f32 %v287, %v292
    %v294 = vadd.f32 %v284, %v293
    %295 = vset.pattern.permute.xlu0 25
    %296 = vperm.xlu0 %295, %v32
    %v297 = vpop.permute.xlu0 %296
    %v299 = vlaneseq
    %v300 = vshrl.u32 %v299, 7
    %v301 = vsub.s32 1, %v300
    %v302 = vrot.slane %v36, %v301
    %v303 = vmul.f32 %v297, %v302
    %v304 = vadd.f32 %v294, %v303
    %305 = vset.pattern.permute.xlu0 26
    %306 = vperm.xlu0 %305, %v32
    %v307 = vpop.permute.xlu0 %306
    %v309 = vlaneseq
    %v310 = vshrl.u32 %v309, 7
    %v311 = vsub.s32 2, %v310
    %v312 = vrot.slane %v36, %v311
    %v313 = vmul.f32 %v307, %v312
    %v314 = vadd.f32 %v304, %v313
    %315 = vset.pattern.permute.xlu0 27
    %316 = vperm.xlu0 %315, %v32
    %v317 = vpop.permute.xlu0 %316
    %v319 = vlaneseq
    %v320 = vshrl.u32 %v319, 7
    %v321 = vsub.s32 3, %v320
    %v322 = vrot.slane %v36, %v321
    %v323 = vmul.f32 %v317, %v322
    %v324 = vadd.f32 %v314, %v323
    %325 = vset.pattern.permute.xlu0 28
    %326 = vperm.xlu0 %325, %v32
    %v327 = vpop.permute.xlu0 %326
    %v329 = vlaneseq
    %v330 = vshrl.u32 %v329, 7
    %v331 = vsub.s32 4, %v330
    %v332 = vrot.slane %v36, %v331
    %v333 = vmul.f32 %v327, %v332
    %v334 = vadd.f32 %v324, %v333
    %335 = vset.pattern.permute.xlu0 29
    %336 = vperm.xlu0 %335, %v32
    %v337 = vpop.permute.xlu0 %336
    %v339 = vlaneseq
    %v340 = vshrl.u32 %v339, 7
    %v341 = vsub.s32 5, %v340
    %v342 = vrot.slane %v36, %v341
    %v343 = vmul.f32 %v337, %v342
    %v344 = vadd.f32 %v334, %v343
    %345 = vset.pattern.permute.xlu0 30
    %346 = vperm.xlu0 %345, %v32
    %v347 = vpop.permute.xlu0 %346
    %v349 = vlaneseq
    %v350 = vshrl.u32 %v349, 7
    %v351 = vsub.s32 6, %v350
    %v352 = vrot.slane %v36, %v351
    %v353 = vmul.f32 %v347, %v352
    %v354 = vadd.f32 %v344, %v353
    %355 = vset.pattern.permute.xlu0 31
    %356 = vperm.xlu0 %355, %v32
    %v357 = vpop.permute.xlu0 %356
    %v359 = vlaneseq
    %v360 = vshrl.u32 %v359, 7
    %v361 = vsub.s32 7, %v360
    %v362 = vrot.slane %v36, %v361
    %v363 = vmul.f32 %v357, %v362
    %v364 = vadd.f32 %v354, %v363
    %vm365 = vcmask 58368
    %366 = vst.msk [vmem:[#allocation5] sm:$0x3] %vm365, %v364
    %v367 = vld [vmem:[#allocation2] ss:$8 sm:$0xf]
    %v368 = vld [vmem:[#allocation2] ss:$8 sm:$0xf0]
    %v369 = vor.u32 %v367, %v368
    %s370 = scalar_lea.vmem [#allocation2], 64
    %v371 = vld [vmem:[%s370] ss:$8 sm:$0xf]
    %v372 = vld [vmem:[%s370] ss:$8 sm:$0xf0]
    %v373 = vor.u32 %v371, %v372
    %s374 = scalar_lea.vmem [#allocation2], 128
    %v375 = vld [vmem:[%s374] ss:$8 sm:$0x3]
    %377 = vset.pattern.permute.xlu0 0
    %378 = vperm.xlu0 %377, %v364
    %v379 = vpop.permute.xlu0 %378
    %v384 = vlaneseq
    %v385 = vshrl.u32 %v384, 7
    %v386 = vsub.s32 0, %v385
    %v387 = vrot.slane %v369, %v386
    %v388 = vlaneseq
    %v389 = vshrl.u32 %v388, 7
    %v390 = vsub.s32 1, %v389
    %v391 = vrot.slane %v369, %v390
    %v392 = vlaneseq
    %v393 = vshrl.u32 %v392, 7
    %v394 = vsub.s32 2, %v393
    %v395 = vrot.slane %v369, %v394
    %v396 = vlaneseq
    %v397 = vshrl.u32 %v396, 7
    %v398 = vsub.s32 3, %v397
    %v399 = vrot.slane %v369, %v398
    %v400 = vlaneseq
    %v401 = vshrl.u32 %v400, 7
    %v402 = vsub.s32 4, %v401
    %v403 = vrot.slane %v369, %v402
    %v404 = vlaneseq
    %v405 = vshrl.u32 %v404, 7
    %v406 = vsub.s32 5, %v405
    %v407 = vrot.slane %v369, %v406
    %v408 = vlaneseq
    %v409 = vshrl.u32 %v408, 7
    %v410 = vsub.s32 6, %v409
    %v411 = vrot.slane %v369, %v410
    %v412 = vlaneseq
    %v413 = vshrl.u32 %v412, 7
    %v414 = vsub.s32 7, %v413
    %v415 = vrot.slane %v369, %v414
    %v416 = vlaneseq
    %v417 = vshrl.u32 %v416, 7
    %v418 = vsub.s32 0, %v417
    %v419 = vrot.slane %v373, %v418
    %v420 = vlaneseq
    %v421 = vshrl.u32 %v420, 7
    %v422 = vsub.s32 1, %v421
    %v423 = vrot.slane %v373, %v422
    %v424 = vlaneseq
    %v425 = vshrl.u32 %v424, 7
    %v426 = vsub.s32 2, %v425
    %v427 = vrot.slane %v373, %v426
    %v428 = vlaneseq
    %v429 = vshrl.u32 %v428, 7
    %v430 = vsub.s32 3, %v429
    %v431 = vrot.slane %v373, %v430
    %v432 = vlaneseq
    %v433 = vshrl.u32 %v432, 7
    %v434 = vsub.s32 4, %v433
    %v435 = vrot.slane %v373, %v434
    %v436 = vlaneseq
    %v437 = vshrl.u32 %v436, 7
    %v438 = vsub.s32 5, %v437
    %v439 = vrot.slane %v373, %v438
    %v440 = vlaneseq
    %v441 = vshrl.u32 %v440, 7
    %v442 = vsub.s32 6, %v441
    %v443 = vrot.slane %v373, %v442
    %v444 = vlaneseq
    %v445 = vshrl.u32 %v444, 7
    %v446 = vsub.s32 7, %v445
    %v447 = vrot.slane %v373, %v446
    %v448 = vlaneseq
    %v449 = vshrl.u32 %v448, 7
    %v450 = vsub.s32 0, %v449
    %v451 = vrot.slane %v375, %v450
    %v452 = vlaneseq
    %v453 = vshrl.u32 %v452, 7
    %v454 = vsub.s32 1, %v453
    %v455 = vrot.slane %v375, %v454
    %v474 = vmul.f32 %v379, %v387
    %v475 = vmul.f32 %v379, %v391
    %v476 = vmul.f32 %v379, %v395
    %v477 = vmul.f32 %v379, %v399
    %v478 = vmul.f32 %v379, %v403
    %v479 = vmul.f32 %v379, %v407
    %v480 = vmul.f32 %v379, %v411
    %v481 = vmul.f32 %v379, %v415
    %v482 = vmul.f32 %v379, %v419
    %v483 = vmul.f32 %v379, %v423
    %v484 = vmul.f32 %v379, %v427
    %v485 = vmul.f32 %v379, %v431
    %v486 = vmul.f32 %v379, %v435
    %v487 = vmul.f32 %v379, %v439
    %v488 = vmul.f32 %v379, %v443
    %v489 = vmul.f32 %v379, %v447
    %v490 = vmul.f32 %v379, %v451
    %v491 = vmul.f32 %v379, %v455
    %v510 = vcombine.low %v474, %v475
    %v511 = vcombine.low %v476, %v477
    %v513 = vunpack.c.l.s4 1983009808
    %v514 = vunpack.c.0.s8 %v513
    %v515 = vlaneseq
    %v516 = vshrl.u32 %v515, 7
    %v517 = vsub.s32 %v514, %v516
    %v518 = vrot.slane %v510, %v517
    %v520 = vunpack.c.l.s4 1983009808
    %v521 = vunpack.c.0.s8 %v520
    %v522 = vlaneseq
    %v523 = vshrl.u32 %v522, 7
    %v524 = vsub.s32 %v521, %v523
    %v525 = vrot.slane %v511, %v524
    %v526 = vcombine.low %v518, %v525
    %v527 = vcombine.low %v478, %v479
    %v528 = vcombine.low %v480, %v481
    %v530 = vunpack.c.l.s4 1983009808
    %v531 = vunpack.c.0.s8 %v530
    %v532 = vlaneseq
    %v533 = vshrl.u32 %v532, 7
    %v534 = vsub.s32 %v531, %v533
    %v535 = vrot.slane %v527, %v534
    %v537 = vunpack.c.l.s4 1983009808
    %v538 = vunpack.c.0.s8 %v537
    %v539 = vlaneseq
    %v540 = vshrl.u32 %v539, 7
    %v541 = vsub.s32 %v538, %v540
    %v542 = vrot.slane %v528, %v541
    %v543 = vcombine.low %v535, %v542
    %v544 = vcombine.low %v482, %v483
    %v545 = vcombine.low %v484, %v485
    %v547 = vunpack.c.l.s4 1983009808
    %v548 = vunpack.c.0.s8 %v547
    %v549 = vlaneseq
    %v550 = vshrl.u32 %v549, 7
    %v551 = vsub.s32 %v548, %v550
    %v552 = vrot.slane %v544, %v551
    %v554 = vunpack.c.l.s4 1983009808
    %v555 = vunpack.c.0.s8 %v554
    %v556 = vlaneseq
    %v557 = vshrl.u32 %v556, 7
    %v558 = vsub.s32 %v555, %v557
    %v559 = vrot.slane %v545, %v558
    %v560 = vcombine.low %v552, %v559
    %v561 = vcombine.low %v486, %v487
    %v562 = vcombine.low %v488, %v489
    %v564 = vunpack.c.l.s4 1983009808
    %v565 = vunpack.c.0.s8 %v564
    %v566 = vlaneseq
    %v567 = vshrl.u32 %v566, 7
    %v568 = vsub.s32 %v565, %v567
    %v569 = vrot.slane %v561, %v568
    %v571 = vunpack.c.l.s4 1983009808
    %v572 = vunpack.c.0.s8 %v571
    %v573 = vlaneseq
    %v574 = vshrl.u32 %v573, 7
    %v575 = vsub.s32 %v572, %v574
    %v576 = vrot.slane %v562, %v575
    %v577 = vcombine.low %v569, %v576
    %v578 = vcombine.low %v490, %v491
    %v580 = vunpack.c.l.s4 1983009808
    %v581 = vunpack.c.0.s8 %v580
    %v582 = vlaneseq
    %v583 = vshrl.u32 %v582, 7
    %v584 = vsub.s32 %v581, %v583
    %v585 = vrot.slane %v578, %v584
    %591 = vst [vmem:[%s5] sm:$0xff] %v526
    %592 = vst [vmem:[%s5 + $0x8] sm:$0xff] %v543
    %593 = vst [vmem:[%s5 + $0x10] sm:$0xff] %v560
    %594 = vst [vmem:[%s5 + $0x18] sm:$0xff] %v577
    %595 = vst [vmem:[%s5 + $0x20] sm:$0xf] %v585
    %v596 = vld [vmem:[%s5] sm:$0xff]
    %v597 = vld [vmem:[%s5 + $0x8] sm:$0xff]
    %v598 = vld [vmem:[%s5 + $0x10] sm:$0xff]
    %v599 = vld [vmem:[%s5 + $0x18] sm:$0xff]
    %v600 = vld [vmem:[%s5 + $0x20] sm:$0xf]
    %s601 = scalar_lea.vmem [#allocation2], 1
    %v602 = vld [vmem:[%s601] ss:$8 sm:$0xf]
    %v603 = vld [vmem:[%s601] ss:$8 sm:$0xf0]
    %v604 = vor.u32 %v602, %v603
    %s605 = scalar_lea.vmem [#allocation2], 65
    %v606 = vld [vmem:[%s605] ss:$8 sm:$0xf]
    %v607 = vld [vmem:[%s605] ss:$8 sm:$0xf0]
    %v608 = vor.u32 %v606, %v607
    %s609 = scalar_lea.vmem [#allocation2], 129
    %v610 = vld [vmem:[%s609] ss:$8 sm:$0x3]
    %611 = vset.pattern.permute.xlu0 1
    %612 = vperm.xlu0 %611, %v364
    %v613 = vpop.permute.xlu0 %612
    %v618 = vlaneseq
    %v619 = vshrl.u32 %v618, 7
    %v620 = vsub.s32 0, %v619
    %v621 = vrot.slane %v604, %v620
    %v622 = vlaneseq
    %v623 = vshrl.u32 %v622, 7
    %v624 = vsub.s32 1, %v623
    %v625 = vrot.slane %v604, %v624
    %v626 = vlaneseq
    %v627 = vshrl.u32 %v626, 7
    %v628 = vsub.s32 2, %v627
    %v629 = vrot.slane %v604, %v628
    %v630 = vlaneseq
    %v631 = vshrl.u32 %v630, 7
    %v632 = vsub.s32 3, %v631
    %v633 = vrot.slane %v604, %v632
    %v634 = vlaneseq
    %v635 = vshrl.u32 %v634, 7
    %v636 = vsub.s32 4, %v635
    %v637 = vrot.slane %v604, %v636
    %v638 = vlaneseq
    %v639 = vshrl.u32 %v638, 7
    %v640 = vsub.s32 5, %v639
    %v641 = vrot.slane %v604, %v640
    %v642 = vlaneseq
    %v643 = vshrl.u32 %v642, 7
    %v644 = vsub.s32 6, %v643
    %v645 = vrot.slane %v604, %v644
    %v646 = vlaneseq
    %v647 = vshrl.u32 %v646, 7
    %v648 = vsub.s32 7, %v647
    %v649 = vrot.slane %v604, %v648
    %v650 = vlaneseq
    %v651 = vshrl.u32 %v650, 7
    %v652 = vsub.s32 0, %v651
    %v653 = vrot.slane %v608, %v652
    %v654 = vlaneseq
    %v655 = vshrl.u32 %v654, 7
    %v656 = vsub.s32 1, %v655
    %v657 = vrot.slane %v608, %v656
    %v658 = vlaneseq
    %v659 = vshrl.u32 %v658, 7
    %v660 = vsub.s32 2, %v659
    %v661 = vrot.slane %v608, %v660
    %v662 = vlaneseq
    %v663 = vshrl.u32 %v662, 7
    %v664 = vsub.s32 3, %v663
    %v665 = vrot.slane %v608, %v664
    %v666 = vlaneseq
    %v667 = vshrl.u32 %v666, 7
    %v668 = vsub.s32 4, %v667
    %v669 = vrot.slane %v608, %v668
    %v670 = vlaneseq
    %v671 = vshrl.u32 %v670, 7
    %v672 = vsub.s32 5, %v671
    %v673 = vrot.slane %v608, %v672
    %v674 = vlaneseq
    %v675 = vshrl.u32 %v674, 7
    %v676 = vsub.s32 6, %v675
    %v677 = vrot.slane %v608, %v676
    %v678 = vlaneseq
    %v679 = vshrl.u32 %v678, 7
    %v680 = vsub.s32 7, %v679
    %v681 = vrot.slane %v608, %v680
    %v682 = vlaneseq
    %v683 = vshrl.u32 %v682, 7
    %v684 = vsub.s32 0, %v683
    %v685 = vrot.slane %v610, %v684
    %v686 = vlaneseq
    %v687 = vshrl.u32 %v686, 7
    %v688 = vsub.s32 1, %v687
    %v689 = vrot.slane %v610, %v688
    %v708 = vmul.f32 %v613, %v621
    %v709 = vmul.f32 %v613, %v625
    %v710 = vmul.f32 %v613, %v629
    %v711 = vmul.f32 %v613, %v633
    %v712 = vmul.f32 %v613, %v637
    %v713 = vmul.f32 %v613, %v641
    %v714 = vmul.f32 %v613, %v645
    %v715 = vmul.f32 %v613, %v649
    %v716 = vmul.f32 %v613, %v653
    %v717 = vmul.f32 %v613, %v657
    %v718 = vmul.f32 %v613, %v661
    %v719 = vmul.f32 %v613, %v665
    %v720 = vmul.f32 %v613, %v669
    %v721 = vmul.f32 %v613, %v673
    %v722 = vmul.f32 %v613, %v677
    %v723 = vmul.f32 %v613, %v681
    %v724 = vmul.f32 %v613, %v685
    %v725 = vmul.f32 %v613, %v689
    %v744 = vcombine.low %v708, %v709
    %v745 = vcombine.low %v710, %v711
    %v747 = vunpack.c.l.s4 1983009808
    %v748 = vunpack.c.0.s8 %v747
    %v749 = vlaneseq
    %v750 = vshrl.u32 %v749, 7
    %v751 = vsub.s32 %v748, %v750
    %v752 = vrot.slane %v744, %v751
    %v754 = vunpack.c.l.s4 1983009808
    %v755 = vunpack.c.0.s8 %v754
    %v756 = vlaneseq
    %v757 = vshrl.u32 %v756, 7
    %v758 = vsub.s32 %v755, %v757
    %v759 = vrot.slane %v745, %v758
    %v760 = vcombine.low %v752, %v759
    %v761 = vcombine.low %v712, %v713
    %v762 = vcombine.low %v714, %v715
    %v764 = vunpack.c.l.s4 1983009808
    %v765 = vunpack.c.0.s8 %v764
    %v766 = vlaneseq
    %v767 = vshrl.u32 %v766, 7
    %v768 = vsub.s32 %v765, %v767
    %v769 = vrot.slane %v761, %v768
    %v771 = vunpack.c.l.s4 1983009808
    %v772 = vunpack.c.0.s8 %v771
    %v773 = vlaneseq
    %v774 = vshrl.u32 %v773, 7
    %v775 = vsub.s32 %v772, %v774
    %v776 = vrot.slane %v762, %v775
    %v777 = vcombine.low %v769, %v776
    %v778 = vcombine.low %v716, %v717
    %v779 = vcombine.low %v718, %v719
    %v781 = vunpack.c.l.s4 1983009808
    %v782 = vunpack.c.0.s8 %v781
    %v783 = vlaneseq
    %v784 = vshrl.u32 %v783, 7
    %v785 = vsub.s32 %v782, %v784
    %v786 = vrot.slane %v778, %v785
    %v788 = vunpack.c.l.s4 1983009808
    %v789 = vunpack.c.0.s8 %v788
    %v790 = vlaneseq
    %v791 = vshrl.u32 %v790, 7
    %v792 = vsub.s32 %v789, %v791
    %v793 = vrot.slane %v779, %v792
    %v794 = vcombine.low %v786, %v793
    %v795 = vcombine.low %v720, %v721
    %v796 = vcombine.low %v722, %v723
    %v798 = vunpack.c.l.s4 1983009808
    %v799 = vunpack.c.0.s8 %v798
    %v800 = vlaneseq
    %v801 = vshrl.u32 %v800, 7
    %v802 = vsub.s32 %v799, %v801
    %v803 = vrot.slane %v795, %v802
    %v805 = vunpack.c.l.s4 1983009808
    %v806 = vunpack.c.0.s8 %v805
    %v807 = vlaneseq
    %v808 = vshrl.u32 %v807, 7
    %v809 = vsub.s32 %v806, %v808
    %v810 = vrot.slane %v796, %v809
    %v811 = vcombine.low %v803, %v810
    %v812 = vcombine.low %v724, %v725
    %v814 = vunpack.c.l.s4 1983009808
    %v815 = vunpack.c.0.s8 %v814
    %v816 = vlaneseq
    %v817 = vshrl.u32 %v816, 7
    %v818 = vsub.s32 %v815, %v817
    %v819 = vrot.slane %v812, %v818
    %v825 = vadd.f32 %v596, %v760
    %v826 = vadd.f32 %v597, %v777
    %v827 = vadd.f32 %v598, %v794
    %v828 = vadd.f32 %v599, %v811
    %v829 = vadd.f32 %v600, %v819
    %830 = vst [vmem:[%s5] sm:$0xff] %v825
    %831 = vst [vmem:[%s5 + $0x8] sm:$0xff] %v826
    %832 = vst [vmem:[%s5 + $0x10] sm:$0xff] %v827
    %833 = vst [vmem:[%s5 + $0x18] sm:$0xff] %v828
    %834 = vst [vmem:[%s5 + $0x20] sm:$0xf] %v829
    %v835 = vld [vmem:[%s5] sm:$0xff]
    %v836 = vld [vmem:[%s5 + $0x8] sm:$0xff]
    %v837 = vld [vmem:[%s5 + $0x10] sm:$0xff]
    %v838 = vld [vmem:[%s5 + $0x18] sm:$0xff]
    %v839 = vld [vmem:[%s5 + $0x20] sm:$0xf]
    %s840 = scalar_lea.vmem [#allocation2], 2
    %v841 = vld [vmem:[%s840] ss:$8 sm:$0xf]
    %v842 = vld [vmem:[%s840] ss:$8 sm:$0xf0]
    %v843 = vor.u32 %v841, %v842
    %s844 = scalar_lea.vmem [#allocation2], 66
    %v845 = vld [vmem:[%s844] ss:$8 sm:$0xf]
    %v846 = vld [vmem:[%s844] ss:$8 sm:$0xf0]
    %v847 = vor.u32 %v845, %v846
    %s848 = scalar_lea.vmem [#allocation2], 130
    %v849 = vld [vmem:[%s848] ss:$8 sm:$0x3]
    %850 = vset.pattern.permute.xlu0 2
    %851 = vperm.xlu0 %850, %v364
    %v852 = vpop.permute.xlu0 %851
    %v857 = vlaneseq
    %v858 = vshrl.u32 %v857, 7
    %v859 = vsub.s32 0, %v858
    %v860 = vrot.slane %v843, %v859
    %v861 = vlaneseq
    %v862 = vshrl.u32 %v861, 7
    %v863 = vsub.s32 1, %v862
    %v864 = vrot.slane %v843, %v863
    %v865 = vlaneseq
    %v866 = vshrl.u32 %v865, 7
    %v867 = vsub.s32 2, %v866
    %v868 = vrot.slane %v843, %v867
    %v869 = vlaneseq
    %v870 = vshrl.u32 %v869, 7
    %v871 = vsub.s32 3, %v870
    %v872 = vrot.slane %v843, %v871
    %v873 = vlaneseq
    %v874 = vshrl.u32 %v873, 7
    %v875 = vsub.s32 4, %v874
    %v876 = vrot.slane %v843, %v875
    %v877 = vlaneseq
    %v878 = vshrl.u32 %v877, 7
    %v879 = vsub.s32 5, %v878
    %v880 = vrot.slane %v843, %v879
    %v881 = vlaneseq
    %v882 = vshrl.u32 %v881, 7
    %v883 = vsub.s32 6, %v882
    %v884 = vrot.slane %v843, %v883
    %v885 = vlaneseq
    %v886 = vshrl.u32 %v885, 7
    %v887 = vsub.s32 7, %v886
    %v888 = vrot.slane %v843, %v887
    %v889 = vlaneseq
    %v890 = vshrl.u32 %v889, 7
    %v891 = vsub.s32 0, %v890
    %v892 = vrot.slane %v847, %v891
    %v893 = vlaneseq
    %v894 = vshrl.u32 %v893, 7
    %v895 = vsub.s32 1, %v894
    %v896 = vrot.slane %v847, %v895
    %v897 = vlaneseq
    %v898 = vshrl.u32 %v897, 7
    %v899 = vsub.s32 2, %v898
    %v900 = vrot.slane %v847, %v899
    %v901 = vlaneseq
    %v902 = vshrl.u32 %v901, 7
    %v903 = vsub.s32 3, %v902
    %v904 = vrot.slane %v847, %v903
    %v905 = vlaneseq
    %v906 = vshrl.u32 %v905, 7
    %v907 = vsub.s32 4, %v906
    %v908 = vrot.slane %v847, %v907
    %v909 = vlaneseq
    %v910 = vshrl.u32 %v909, 7
    %v911 = vsub.s32 5, %v910
    %v912 = vrot.slane %v847, %v911
    %v913 = vlaneseq
    %v914 = vshrl.u32 %v913, 7
    %v915 = vsub.s32 6, %v914
    %v916 = vrot.slane %v847, %v915
    %v917 = vlaneseq
    %v918 = vshrl.u32 %v917, 7
    %v919 = vsub.s32 7, %v918
    %v920 = vrot.slane %v847, %v919
    %v921 = vlaneseq
    %v922 = vshrl.u32 %v921, 7
    %v923 = vsub.s32 0, %v922
    %v924 = vrot.slane %v849, %v923
    %v925 = vlaneseq
    %v926 = vshrl.u32 %v925, 7
    %v927 = vsub.s32 1, %v926
    %v928 = vrot.slane %v849, %v927
    %v947 = vmul.f32 %v852, %v860
    %v948 = vmul.f32 %v852, %v864
    %v949 = vmul.f32 %v852, %v868
    %v950 = vmul.f32 %v852, %v872
    %v951 = vmul.f32 %v852, %v876
    %v952 = vmul.f32 %v852, %v880
    %v953 = vmul.f32 %v852, %v884
    %v954 = vmul.f32 %v852, %v888
    %v955 = vmul.f32 %v852, %v892
    %v956 = vmul.f32 %v852, %v896
    %v957 = vmul.f32 %v852, %v900
    %v958 = vmul.f32 %v852, %v904
    %v959 = vmul.f32 %v852, %v908
    %v960 = vmul.f32 %v852, %v912
    %v961 = vmul.f32 %v852, %v916
    %v962 = vmul.f32 %v852, %v920
    %v963 = vmul.f32 %v852, %v924
    %v964 = vmul.f32 %v852, %v928
    %v983 = vcombine.low %v947, %v948
    %v984 = vcombine.low %v949, %v950
    %v986 = vunpack.c.l.s4 1983009808
    %v987 = vunpack.c.0.s8 %v986
    %v988 = vlaneseq
    %v989 = vshrl.u32 %v988, 7
    %v990 = vsub.s32 %v987, %v989
    %v991 = vrot.slane %v983, %v990
    %v993 = vunpack.c.l.s4 1983009808
    %v994 = vunpack.c.0.s8 %v993
    %v995 = vlaneseq
    %v996 = vshrl.u32 %v995, 7
    %v997 = vsub.s32 %v994, %v996
    %v998 = vrot.slane %v984, %v997
    %v999 = vcombine.low %v991, %v998
    %v1000 = vcombine.low %v951, %v952
    %v1001 = vcombine.low %v953, %v954
    %v1003 = vunpack.c.l.s4 1983009808
    %v1004 = vunpack.c.0.s8 %v1003
    %v1005 = vlaneseq
    %v1006 = vshrl.u32 %v1005, 7
    %v1007 = vsub.s32 %v1004, %v1006
    %v1008 = vrot.slane %v1000, %v1007
    %v1010 = vunpack.c.l.s4 1983009808
    %v1011 = vunpack.c.0.s8 %v1010
    %v1012 = vlaneseq
    %v1013 = vshrl.u32 %v1012, 7
    %v1014 = vsub.s32 %v1011, %v1013
    %v1015 = vrot.slane %v1001, %v1014
    %v1016 = vcombine.low %v1008, %v1015
    %v1017 = vcombine.low %v955, %v956
    %v1018 = vcombine.low %v957, %v958
    %v1020 = vunpack.c.l.s4 1983009808
    %v1021 = vunpack.c.0.s8 %v1020
    %v1022 = vlaneseq
    %v1023 = vshrl.u32 %v1022, 7
    %v1024 = vsub.s32 %v1021, %v1023
    %v1025 = vrot.slane %v1017, %v1024
    %v1027 = vunpack.c.l.s4 1983009808
    %v1028 = vunpack.c.0.s8 %v1027
    %v1029 = vlaneseq
    %v1030 = vshrl.u32 %v1029, 7
    %v1031 = vsub.s32 %v1028, %v1030
    %v1032 = vrot.slane %v1018, %v1031
    %v1033 = vcombine.low %v1025, %v1032
    %v1034 = vcombine.low %v959, %v960
    %v1035 = vcombine.low %v961, %v962
    %v1037 = vunpack.c.l.s4 1983009808
    %v1038 = vunpack.c.0.s8 %v1037
    %v1039 = vlaneseq
    %v1040 = vshrl.u32 %v1039, 7
    %v1041 = vsub.s32 %v1038, %v1040
    %v1042 = vrot.slane %v1034, %v1041
    %v1044 = vunpack.c.l.s4 1983009808
    %v1045 = vunpack.c.0.s8 %v1044
    %v1046 = vlaneseq
    %v1047 = vshrl.u32 %v1046, 7
    %v1048 = vsub.s32 %v1045, %v1047
    %v1049 = vrot.slane %v1035, %v1048
    %v1050 = vcombine.low %v1042, %v1049
    %v1051 = vcombine.low %v963, %v964
    %v1053 = vunpack.c.l.s4 1983009808
    %v1054 = vunpack.c.0.s8 %v1053
    %v1055 = vlaneseq
    %v1056 = vshrl.u32 %v1055, 7
    %v1057 = vsub.s32 %v1054, %v1056
    %v1058 = vrot.slane %v1051, %v1057
    %v1064 = vadd.f32 %v835, %v999
    %v1065 = vadd.f32 %v836, %v1016
    %v1066 = vadd.f32 %v837, %v1033
    %v1067 = vadd.f32 %v838, %v1050
    %v1068 = vadd.f32 %v839, %v1058
    %1069 = vst [vmem:[%s5] sm:$0xff] %v1064
    %1070 = vst [vmem:[%s5 + $0x8] sm:$0xff] %v1065
    %1071 = vst [vmem:[%s5 + $0x10] sm:$0xff] %v1066
    %1072 = vst [vmem:[%s5 + $0x18] sm:$0xff] %v1067
    %1073 = vst [vmem:[%s5 + $0x20] sm:$0xf] %v1068
    %v1074 = vld [vmem:[%s5] sm:$0xff]
    %v1075 = vld [vmem:[%s5 + $0x8] sm:$0xff]
    %v1076 = vld [vmem:[%s5 + $0x10] sm:$0xff]
    %v1077 = vld [vmem:[%s5 + $0x18] sm:$0xff]
    %v1078 = vld [vmem:[%s5 + $0x20] sm:$0xf]
    %s1079 = scalar_lea.vmem [#allocation2], 3
    %v1080 = vld [vmem:[%s1079] ss:$8 sm:$0xf]
    %v1081 = vld [vmem:[%s1079] ss:$8 sm:$0xf0]
    %v1082 = vor.u32 %v1080, %v1081
    %s1083 = scalar_lea.vmem [#allocation2], 67
    %v1084 = vld [vmem:[%s1083] ss:$8 sm:$0xf]
    %v1085 = vld [vmem:[%s1083] ss:$8 sm:$0xf0]
    %v1086 = vor.u32 %v1084, %v1085
    %s1087 = scalar_lea.vmem [#allocation2], 131
    %v1088 = vld [vmem:[%s1087] ss:$8 sm:$0x3]
    %1089 = vset.pattern.permute.xlu0 3
    %1090 = vperm.xlu0 %1089, %v364
    %v1091 = vpop.permute.xlu0 %1090
    %v1096 = vlaneseq
    %v1097 = vshrl.u32 %v1096, 7
    %v1098 = vsub.s32 0, %v1097
    %v1099 = vrot.slane %v1082, %v1098
    %v1100 = vlaneseq
    %v1101 = vshrl.u32 %v1100, 7
    %v1102 = vsub.s32 1, %v1101
    %v1103 = vrot.slane %v1082, %v1102
    %v1104 = vlaneseq
    %v1105 = vshrl.u32 %v1104, 7
    %v1106 = vsub.s32 2, %v1105
    %v1107 = vrot.slane %v1082, %v1106
    %v1108 = vlaneseq
    %v1109 = vshrl.u32 %v1108, 7
    %v1110 = vsub.s32 3, %v1109
    %v1111 = vrot.slane %v1082, %v1110
    %v1112 = vlaneseq
    %v1113 = vshrl.u32 %v1112, 7
    %v1114 = vsub.s32 4, %v1113
    %v1115 = vrot.slane %v1082, %v1114
    %v1116 = vlaneseq
    %v1117 = vshrl.u32 %v1116, 7
    %v1118 = vsub.s32 5, %v1117
    %v1119 = vrot.slane %v1082, %v1118
    %v1120 = vlaneseq
    %v1121 = vshrl.u32 %v1120, 7
    %v1122 = vsub.s32 6, %v1121
    %v1123 = vrot.slane %v1082, %v1122
    %v1124 = vlaneseq
    %v1125 = vshrl.u32 %v1124, 7
    %v1126 = vsub.s32 7, %v1125
    %v1127 = vrot.slane %v1082, %v1126
    %v1128 = vlaneseq
    %v1129 = vshrl.u32 %v1128, 7
    %v1130 = vsub.s32 0, %v1129
    %v1131 = vrot.slane %v1086, %v1130
    %v1132 = vlaneseq
    %v1133 = vshrl.u32 %v1132, 7
    %v1134 = vsub.s32 1, %v1133
    %v1135 = vrot.slane %v1086, %v1134
    %v1136 = vlaneseq
    %v1137 = vshrl.u32 %v1136, 7
    %v1138 = vsub.s32 2, %v1137
    %v1139 = vrot.slane %v1086, %v1138
    %v1140 = vlaneseq
    %v1141 = vshrl.u32 %v1140, 7
    %v1142 = vsub.s32 3, %v1141
    %v1143 = vrot.slane %v1086, %v1142
    %v1144 = vlaneseq
    %v1145 = vshrl.u32 %v1144, 7
    %v1146 = vsub.s32 4, %v1145
    %v1147 = vrot.slane %v1086, %v1146
    %v1148 = vlaneseq
    %v1149 = vshrl.u32 %v1148, 7
    %v1150 = vsub.s32 5, %v1149
    %v1151 = vrot.slane %v1086, %v1150
    %v1152 = vlaneseq
    %v1153 = vshrl.u32 %v1152, 7
    %v1154 = vsub.s32 6, %v1153
    %v1155 = vrot.slane %v1086, %v1154
    %v1156 = vlaneseq
    %v1157 = vshrl.u32 %v1156, 7
    %v1158 = vsub.s32 7, %v1157
    %v1159 = vrot.slane %v1086, %v1158
    %v1160 = vlaneseq
    %v1161 = vshrl.u32 %v1160, 7
    %v1162 = vsub.s32 0, %v1161
    %v1163 = vrot.slane %v1088, %v1162
    %v1164 = vlaneseq
    %v1165 = vshrl.u32 %v1164, 7
    %v1166 = vsub.s32 1, %v1165
    %v1167 = vrot.slane %v1088, %v1166
    %v1186 = vmul.f32 %v1091, %v1099
    %v1187 = vmul.f32 %v1091, %v1103
    %v1188 = vmul.f32 %v1091, %v1107
    %v1189 = vmul.f32 %v1091, %v1111
    %v1190 = vmul.f32 %v1091, %v1115
    %v1191 = vmul.f32 %v1091, %v1119
    %v1192 = vmul.f32 %v1091, %v1123
    %v1193 = vmul.f32 %v1091, %v1127
    %v1194 = vmul.f32 %v1091, %v1131
    %v1195 = vmul.f32 %v1091, %v1135
    %v1196 = vmul.f32 %v1091, %v1139
    %v1197 = vmul.f32 %v1091, %v1143
    %v1198 = vmul.f32 %v1091, %v1147
    %v1199 = vmul.f32 %v1091, %v1151
    %v1200 = vmul.f32 %v1091, %v1155
    %v1201 = vmul.f32 %v1091, %v1159
    %v1202 = vmul.f32 %v1091, %v1163
    %v1203 = vmul.f32 %v1091, %v1167
    %v1222 = vcombine.low %v1186, %v1187
    %v1223 = vcombine.low %v1188, %v1189
    %v1225 = vunpack.c.l.s4 1983009808
    %v1226 = vunpack.c.0.s8 %v1225
    %v1227 = vlaneseq
    %v1228 = vshrl.u32 %v1227, 7
    %v1229 = vsub.s32 %v1226, %v1228
    %v1230 = vrot.slane %v1222, %v1229
    %v1232 = vunpack.c.l.s4 1983009808
    %v1233 = vunpack.c.0.s8 %v1232
    %v1234 = vlaneseq
    %v1235 = vshrl.u32 %v1234, 7
    %v1236 = vsub.s32 %v1233, %v1235
    %v1237 = vrot.slane %v1223, %v1236
    %v1238 = vcombine.low %v1230, %v1237
    %v1239 = vcombine.low %v1190, %v1191
    %v1240 = vcombine.low %v1192, %v1193
    %v1242 = vunpack.c.l.s4 1983009808
    %v1243 = vunpack.c.0.s8 %v1242
    %v1244 = vlaneseq
    %v1245 = vshrl.u32 %v1244, 7
    %v1246 = vsub.s32 %v1243, %v1245
    %v1247 = vrot.slane %v1239, %v1246
    %v1249 = vunpack.c.l.s4 1983009808
    %v1250 = vunpack.c.0.s8 %v1249
    %v1251 = vlaneseq
    %v1252 = vshrl.u32 %v1251, 7
    %v1253 = vsub.s32 %v1250, %v1252
    %v1254 = vrot.slane %v1240, %v1253
    %v1255 = vcombine.low %v1247, %v1254
    %v1256 = vcombine.low %v1194, %v1195
    %v1257 = vcombine.low %v1196, %v1197
    %v1259 = vunpack.c.l.s4 1983009808
    %v1260 = vunpack.c.0.s8 %v1259
    %v1261 = vlaneseq
    %v1262 = vshrl.u32 %v1261, 7
    %v1263 = vsub.s32 %v1260, %v1262
    %v1264 = vrot.slane %v1256, %v1263
    %v1266 = vunpack.c.l.s4 1983009808
    %v1267 = vunpack.c.0.s8 %v1266
    %v1268 = vlaneseq
    %v1269 = vshrl.u32 %v1268, 7
    %v1270 = vsub.s32 %v1267, %v1269
    %v1271 = vrot.slane %v1257, %v1270
    %v1272 = vcombine.low %v1264, %v1271
    %v1273 = vcombine.low %v1198, %v1199
    %v1274 = vcombine.low %v1200, %v1201
    %v1276 = vunpack.c.l.s4 1983009808
    %v1277 = vunpack.c.0.s8 %v1276
    %v1278 = vlaneseq
    %v1279 = vshrl.u32 %v1278, 7
    %v1280 = vsub.s32 %v1277, %v1279
    %v1281 = vrot.slane %v1273, %v1280
    %v1283 = vunpack.c.l.s4 1983009808
    %v1284 = vunpack.c.0.s8 %v1283
    %v1285 = vlaneseq
    %v1286 = vshrl.u32 %v1285, 7
    %v1287 = vsub.s32 %v1284, %v1286
    %v1288 = vrot.slane %v1274, %v1287
    %v1289 = vcombine.low %v1281, %v1288
    %v1290 = vcombine.low %v1202, %v1203
    %v1292 = vunpack.c.l.s4 1983009808
    %v1293 = vunpack.c.0.s8 %v1292
    %v1294 = vlaneseq
    %v1295 = vshrl.u32 %v1294, 7
    %v1296 = vsub.s32 %v1293, %v1295
    %v1297 = vrot.slane %v1290, %v1296
    %v1303 = vadd.f32 %v1074, %v1238
    %v1304 = vadd.f32 %v1075, %v1255
    %v1305 = vadd.f32 %v1076, %v1272
    %v1306 = vadd.f32 %v1077, %v1289
    %v1307 = vadd.f32 %v1078, %v1297
    %1308 = vst [vmem:[%s5] sm:$0xff] %v1303
    %1309 = vst [vmem:[%s5 + $0x8] sm:$0xff] %v1304
    %1310 = vst [vmem:[%s5 + $0x10] sm:$0xff] %v1305
    %1311 = vst [vmem:[%s5 + $0x18] sm:$0xff] %v1306
    %1312 = vst [vmem:[%s5 + $0x20] sm:$0xf] %v1307
    %v1313 = vld [vmem:[%s5] sm:$0xff]
    %v1314 = vld [vmem:[%s5 + $0x8] sm:$0xff]
    %v1315 = vld [vmem:[%s5 + $0x10] sm:$0xff]
    %v1316 = vld [vmem:[%s5 + $0x18] sm:$0xff]
    %v1317 = vld [vmem:[%s5 + $0x20] sm:$0xf]
    %s1318 = scalar_lea.vmem [#allocation2], 4
    %v1319 = vld [vmem:[%s1318] ss:$8 sm:$0xf]
    %v1320 = vld [vmem:[%s1318] ss:$8 sm:$0xf0]
    %v1321 = vor.u32 %v1319, %v1320
    %s1322 = scalar_lea.vmem [#allocation2], 68
    %v1323 = vld [vmem:[%s1322] ss:$8 sm:$0xf]
    %v1324 = vld [vmem:[%s1322] ss:$8 sm:$0xf0]
    %v1325 = vor.u32 %v1323, %v1324
    %s1326 = scalar_lea.vmem [#allocation2], 132
    %v1327 = vld [vmem:[%s1326] ss:$8 sm:$0x3]
    %1328 = vset.pattern.permute.xlu0 4
    %1329 = vperm.xlu0 %1328, %v364
    %v1330 = vpop.permute.xlu0 %1329
    %v1335 = vlaneseq
    %v1336 = vshrl.u32 %v1335, 7
    %v1337 = vsub.s32 0, %v1336
    %v1338 = vrot.slane %v1321, %v1337
    %v1339 = vlaneseq
    %v1340 = vshrl.u32 %v1339, 7
    %v1341 = vsub.s32 1, %v1340
    %v1342 = vrot.slane %v1321, %v1341
    %v1343 = vlaneseq
    %v1344 = vshrl.u32 %v1343, 7
    %v1345 = vsub.s32 2, %v1344
    %v1346 = vrot.slane %v1321, %v1345
    %v1347 = vlaneseq
    %v1348 = vshrl.u32 %v1347, 7
    %v1349 = vsub.s32 3, %v1348
    %v1350 = vrot.slane %v1321, %v1349
    %v1351 = vlaneseq
    %v1352 = vshrl.u32 %v1351, 7
    %v1353 = vsub.s32 4, %v1352
    %v1354 = vrot.slane %v1321, %v1353
    %v1355 = vlaneseq
    %v1356 = vshrl.u32 %v1355, 7
    %v1357 = vsub.s32 5, %v1356
    %v1358 = vrot.slane %v1321, %v1357
    %v1359 = vlaneseq
    %v1360 = vshrl.u32 %v1359, 7
    %v1361 = vsub.s32 6, %v1360
    %v1362 = vrot.slane %v1321, %v1361
    %v1363 = vlaneseq
    %v1364 = vshrl.u32 %v1363, 7
    %v1365 = vsub.s32 7, %v1364
    %v1366 = vrot.slane %v1321, %v1365
    %v1367 = vlaneseq
    %v1368 = vshrl.u32 %v1367, 7
    %v1369 = vsub.s32 0, %v1368
    %v1370 = vrot.slane %v1325, %v1369
    %v1371 = vlaneseq
    %v1372 = vshrl.u32 %v1371, 7
    %v1373 = vsub.s32 1, %v1372
    %v1374 = vrot.slane %v1325, %v1373
    %v1375 = vlaneseq
    %v1376 = vshrl.u32 %v1375, 7
    %v1377 = vsub.s32 2, %v1376
    %v1378 = vrot.slane %v1325, %v1377
    %v1379 = vlaneseq
    %v1380 = vshrl.u32 %v1379, 7
    %v1381 = vsub.s32 3, %v1380
    %v1382 = vrot.slane %v1325, %v1381
    %v1383 = vlaneseq
    %v1384 = vshrl.u32 %v1383, 7
    %v1385 = vsub.s32 4, %v1384
    %v1386 = vrot.slane %v1325, %v1385
    %v1387 = vlaneseq
    %v1388 = vshrl.u32 %v1387, 7
    %v1389 = vsub.s32 5, %v1388
    %v1390 = vrot.slane %v1325, %v1389
    %v1391 = vlaneseq
    %v1392 = vshrl.u32 %v1391, 7
    %v1393 = vsub.s32 6, %v1392
    %v1394 = vrot.slane %v1325, %v1393
    %v1395 = vlaneseq
    %v1396 = vshrl.u32 %v1395, 7
    %v1397 = vsub.s32 7, %v1396
    %v1398 = vrot.slane %v1325, %v1397
    %v1399 = vlaneseq
    %v1400 = vshrl.u32 %v1399, 7
    %v1401 = vsub.s32 0, %v1400
    %v1402 = vrot.slane %v1327, %v1401
    %v1403 = vlaneseq
    %v1404 = vshrl.u32 %v1403, 7
    %v1405 = vsub.s32 1, %v1404
    %v1406 = vrot.slane %v1327, %v1405
    %v1425 = vmul.f32 %v1330, %v1338
    %v1426 = vmul.f32 %v1330, %v1342
    %v1427 = vmul.f32 %v1330, %v1346
    %v1428 = vmul.f32 %v1330, %v1350
    %v1429 = vmul.f32 %v1330, %v1354
    %v1430 = vmul.f32 %v1330, %v1358
    %v1431 = vmul.f32 %v1330, %v1362
    %v1432 = vmul.f32 %v1330, %v1366
    %v1433 = vmul.f32 %v1330, %v1370
    %v1434 = vmul.f32 %v1330, %v1374
    %v1435 = vmul.f32 %v1330, %v1378
    %v1436 = vmul.f32 %v1330, %v1382
    %v1437 = vmul.f32 %v1330, %v1386
    %v1438 = vmul.f32 %v1330, %v1390
    %v1439 = vmul.f32 %v1330, %v1394
    %v1440 = vmul.f32 %v1330, %v1398
    %v1441 = vmul.f32 %v1330, %v1402
    %v1442 = vmul.f32 %v1330, %v1406
    %v1461 = vcombine.low %v1425, %v1426
    %v1462 = vcombine.low %v1427, %v1428
    %v1464 = vunpack.c.l.s4 1983009808
    %v1465 = vunpack.c.0.s8 %v1464
    %v1466 = vlaneseq
    %v1467 = vshrl.u32 %v1466, 7
    %v1468 = vsub.s32 %v1465, %v1467
    %v1469 = vrot.slane %v1461, %v1468
    %v1471 = vunpack.c.l.s4 1983009808
    %v1472 = vunpack.c.0.s8 %v1471
    %v1473 = vlaneseq
    %v1474 = vshrl.u32 %v1473, 7
    %v1475 = vsub.s32 %v1472, %v1474
    %v1476 = vrot.slane %v1462, %v1475
    %v1477 = vcombine.low %v1469, %v1476
    %v1478 = vcombine.low %v1429, %v1430
    %v1479 = vcombine.low %v1431, %v1432
    %v1481 = vunpack.c.l.s4 1983009808
    %v1482 = vunpack.c.0.s8 %v1481
    %v1483 = vlaneseq
    %v1484 = vshrl.u32 %v1483, 7
    %v1485 = vsub.s32 %v1482, %v1484
    %v1486 = vrot.slane %v1478, %v1485
    %v1488 = vunpack.c.l.s4 1983009808
    %v1489 = vunpack.c.0.s8 %v1488
    %v1490 = vlaneseq
    %v1491 = vshrl.u32 %v1490, 7
    %v1492 = vsub.s32 %v1489, %v1491
    %v1493 = vrot.slane %v1479, %v1492
    %v1494 = vcombine.low %v1486, %v1493
    %v1495 = vcombine.low %v1433, %v1434
    %v1496 = vcombine.low %v1435, %v1436
    %v1498 = vunpack.c.l.s4 1983009808
    %v1499 = vunpack.c.0.s8 %v1498
    %v1500 = vlaneseq
    %v1501 = vshrl.u32 %v1500, 7
    %v1502 = vsub.s32 %v1499, %v1501
    %v1503 = vrot.slane %v1495, %v1502
    %v1505 = vunpack.c.l.s4 1983009808
    %v1506 = vunpack.c.0.s8 %v1505
    %v1507 = vlaneseq
    %v1508 = vshrl.u32 %v1507, 7
    %v1509 = vsub.s32 %v1506, %v1508
    %v1510 = vrot.slane %v1496, %v1509
    %v1511 = vcombine.low %v1503, %v1510
    %v1512 = vcombine.low %v1437, %v1438
    %v1513 = vcombine.low %v1439, %v1440
    %v1515 = vunpack.c.l.s4 1983009808
    %v1516 = vunpack.c.0.s8 %v1515
    %v1517 = vlaneseq
    %v1518 = vshrl.u32 %v1517, 7
    %v1519 = vsub.s32 %v1516, %v1518
    %v1520 = vrot.slane %v1512, %v1519
    %v1522 = vunpack.c.l.s4 1983009808
    %v1523 = vunpack.c.0.s8 %v1522
    %v1524 = vlaneseq
    %v1525 = vshrl.u32 %v1524, 7
    %v1526 = vsub.s32 %v1523, %v1525
    %v1527 = vrot.slane %v1513, %v1526
    %v1528 = vcombine.low %v1520, %v1527
    %v1529 = vcombine.low %v1441, %v1442
    %v1531 = vunpack.c.l.s4 1983009808
    %v1532 = vunpack.c.0.s8 %v1531
    %v1533 = vlaneseq
    %v1534 = vshrl.u32 %v1533, 7
    %v1535 = vsub.s32 %v1532, %v1534
    %v1536 = vrot.slane %v1529, %v1535
    %v1542 = vadd.f32 %v1313, %v1477
    %v1543 = vadd.f32 %v1314, %v1494
    %v1544 = vadd.f32 %v1315, %v1511
    %v1545 = vadd.f32 %v1316, %v1528
    %v1546 = vadd.f32 %v1317, %v1536
    %1547 = vst [vmem:[%s5] sm:$0xff] %v1542
    %1548 = vst [vmem:[%s5 + $0x8] sm:$0xff] %v1543
    %1549 = vst [vmem:[%s5 + $0x10] sm:$0xff] %v1544
    %1550 = vst [vmem:[%s5 + $0x18] sm:$0xff] %v1545
    %1551 = vst [vmem:[%s5 + $0x20] sm:$0xf] %v1546
    %v1552 = vld [vmem:[%s5] sm:$0xff]
    %v1553 = vld [vmem:[%s5 + $0x8] sm:$0xff]
    %v1554 = vld [vmem:[%s5 + $0x10] sm:$0xff]
    %v1555 = vld [vmem:[%s5 + $0x18] sm:$0xff]
    %v1556 = vld [vmem:[%s5 + $0x20] sm:$0xf]
    %s1557 = scalar_lea.vmem [#allocation2], 5
    %v1558 = vld [vmem:[%s1557] ss:$8 sm:$0xf]
    %v1559 = vld [vmem:[%s1557] ss:$8 sm:$0xf0]
    %v1560 = vor.u32 %v1558, %v1559
    %s1561 = scalar_lea.vmem [#allocation2], 69
    %v1562 = vld [vmem:[%s1561] ss:$8 sm:$0xf]
    %v1563 = vld [vmem:[%s1561] ss:$8 sm:$0xf0]
    %v1564 = vor.u32 %v1562, %v1563
    %s1565 = scalar_lea.vmem [#allocation2], 133
    %v1566 = vld [vmem:[%s1565] ss:$8 sm:$0x3]
    %1567 = vset.pattern.permute.xlu0 5
    %1568 = vperm.xlu0 %1567, %v364
    %v1569 = vpop.permute.xlu0 %1568
    %v1574 = vlaneseq
    %v1575 = vshrl.u32 %v1574, 7
    %v1576 = vsub.s32 0, %v1575
    %v1577 = vrot.slane %v1560, %v1576
    %v1578 = vlaneseq
    %v1579 = vshrl.u32 %v1578, 7
    %v1580 = vsub.s32 1, %v1579
    %v1581 = vrot.slane %v1560, %v1580
    %v1582 = vlaneseq
    %v1583 = vshrl.u32 %v1582, 7
    %v1584 = vsub.s32 2, %v1583
    %v1585 = vrot.slane %v1560, %v1584
    %v1586 = vlaneseq
    %v1587 = vshrl.u32 %v1586, 7
    %v1588 = vsub.s32 3, %v1587
    %v1589 = vrot.slane %v1560, %v1588
    %v1590 = vlaneseq
    %v1591 = vshrl.u32 %v1590, 7
    %v1592 = vsub.s32 4, %v1591
    %v1593 = vrot.slane %v1560, %v1592
    %v1594 = vlaneseq
    %v1595 = vshrl.u32 %v1594, 7
    %v1596 = vsub.s32 5, %v1595
    %v1597 = vrot.slane %v1560, %v1596
    %v1598 = vlaneseq
    %v1599 = vshrl.u32 %v1598, 7
    %v1600 = vsub.s32 6, %v1599
    %v1601 = vrot.slane %v1560, %v1600
    %v1602 = vlaneseq
    %v1603 = vshrl.u32 %v1602, 7
    %v1604 = vsub.s32 7, %v1603
    %v1605 = vrot.slane %v1560, %v1604
    %v1606 = vlaneseq
    %v1607 = vshrl.u32 %v1606, 7
    %v1608 = vsub.s32 0, %v1607
    %v1609 = vrot.slane %v1564, %v1608
    %v1610 = vlaneseq
    %v1611 = vshrl.u32 %v1610, 7
    %v1612 = vsub.s32 1, %v1611
    %v1613 = vrot.slane %v1564, %v1612
    %v1614 = vlaneseq
    %v1615 = vshrl.u32 %v1614, 7
    %v1616 = vsub.s32 2, %v1615
    %v1617 = vrot.slane %v1564, %v1616
    %v1618 = vlaneseq
    %v1619 = vshrl.u32 %v1618, 7
    %v1620 = vsub.s32 3, %v1619
    %v1621 = vrot.slane %v1564, %v1620
    %v1622 = vlaneseq
    %v1623 = vshrl.u32 %v1622, 7
    %v1624 = vsub.s32 4, %v1623
    %v1625 = vrot.slane %v1564, %v1624
    %v1626 = vlaneseq
    %v1627 = vshrl.u32 %v1626, 7
    %v1628 = vsub.s32 5, %v1627
    %v1629 = vrot.slane %v1564, %v1628
    %v1630 = vlaneseq
    %v1631 = vshrl.u32 %v1630, 7
    %v1632 = vsub.s32 6, %v1631
    %v1633 = vrot.slane %v1564, %v1632
    %v1634 = vlaneseq
    %v1635 = vshrl.u32 %v1634, 7
    %v1636 = vsub.s32 7, %v1635
    %v1637 = vrot.slane %v1564, %v1636
    %v1638 = vlaneseq
    %v1639 = vshrl.u32 %v1638, 7
    %v1640 = vsub.s32 0, %v1639
    %v1641 = vrot.slane %v1566, %v1640
    %v1642 = vlaneseq
    %v1643 = vshrl.u32 %v1642, 7
    %v1644 = vsub.s32 1, %v1643
    %v1645 = vrot.slane %v1566, %v1644
    %v1664 = vmul.f32 %v1569, %v1577
    %v1665 = vmul.f32 %v1569, %v1581
    %v1666 = vmul.f32 %v1569, %v1585
    %v1667 = vmul.f32 %v1569, %v1589
    %v1668 = vmul.f32 %v1569, %v1593
    %v1669 = vmul.f32 %v1569, %v1597
    %v1670 = vmul.f32 %v1569, %v1601
    %v1671 = vmul.f32 %v1569, %v1605
    %v1672 = vmul.f32 %v1569, %v1609
    %v1673 = vmul.f32 %v1569, %v1613
    %v1674 = vmul.f32 %v1569, %v1617
    %v1675 = vmul.f32 %v1569, %v1621
    %v1676 = vmul.f32 %v1569, %v1625
    %v1677 = vmul.f32 %v1569, %v1629
    %v1678 = vmul.f32 %v1569, %v1633
    %v1679 = vmul.f32 %v1569, %v1637
    %v1680 = vmul.f32 %v1569, %v1641
    %v1681 = vmul.f32 %v1569, %v1645
    %v1700 = vcombine.low %v1664, %v1665
    %v1701 = vcombine.low %v1666, %v1667
    %v1703 = vunpack.c.l.s4 1983009808
    %v1704 = vunpack.c.0.s8 %v1703
    %v1705 = vlaneseq
    %v1706 = vshrl.u32 %v1705, 7
    %v1707 = vsub.s32 %v1704, %v1706
    %v1708 = vrot.slane %v1700, %v1707
    %v1710 = vunpack.c.l.s4 1983009808
    %v1711 = vunpack.c.0.s8 %v1710
    %v1712 = vlaneseq
    %v1713 = vshrl.u32 %v1712, 7
    %v1714 = vsub.s32 %v1711, %v1713
    %v1715 = vrot.slane %v1701, %v1714
    %v1716 = vcombine.low %v1708, %v1715
    %v1717 = vcombine.low %v1668, %v1669
    %v1718 = vcombine.low %v1670, %v1671
    %v1720 = vunpack.c.l.s4 1983009808
    %v1721 = vunpack.c.0.s8 %v1720
    %v1722 = vlaneseq
    %v1723 = vshrl.u32 %v1722, 7
    %v1724 = vsub.s32 %v1721, %v1723
    %v1725 = vrot.slane %v1717, %v1724
    %v1727 = vunpack.c.l.s4 1983009808
    %v1728 = vunpack.c.0.s8 %v1727
    %v1729 = vlaneseq
    %v1730 = vshrl.u32 %v1729, 7
    %v1731 = vsub.s32 %v1728, %v1730
    %v1732 = vrot.slane %v1718, %v1731
    %v1733 = vcombine.low %v1725, %v1732
    %v1734 = vcombine.low %v1672, %v1673
    %v1735 = vcombine.low %v1674, %v1675
    %v1737 = vunpack.c.l.s4 1983009808
    %v1738 = vunpack.c.0.s8 %v1737
    %v1739 = vlaneseq
    %v1740 = vshrl.u32 %v1739, 7
    %v1741 = vsub.s32 %v1738, %v1740
    %v1742 = vrot.slane %v1734, %v1741
    %v1744 = vunpack.c.l.s4 1983009808
    %v1745 = vunpack.c.0.s8 %v1744
    %v1746 = vlaneseq
    %v1747 = vshrl.u32 %v1746, 7
    %v1748 = vsub.s32 %v1745, %v1747
    %v1749 = vrot.slane %v1735, %v1748
    %v1750 = vcombine.low %v1742, %v1749
    %v1751 = vcombine.low %v1676, %v1677
    %v1752 = vcombine.low %v1678, %v1679
    %v1754 = vunpack.c.l.s4 1983009808
    %v1755 = vunpack.c.0.s8 %v1754
    %v1756 = vlaneseq
    %v1757 = vshrl.u32 %v1756, 7
    %v1758 = vsub.s32 %v1755, %v1757
    %v1759 = vrot.slane %v1751, %v1758
    %v1761 = vunpack.c.l.s4 1983009808
    %v1762 = vunpack.c.0.s8 %v1761
    %v1763 = vlaneseq
    %v1764 = vshrl.u32 %v1763, 7
    %v1765 = vsub.s32 %v1762, %v1764
    %v1766 = vrot.slane %v1752, %v1765
    %v1767 = vcombine.low %v1759, %v1766
    %v1768 = vcombine.low %v1680, %v1681
    %v1770 = vunpack.c.l.s4 1983009808
    %v1771 = vunpack.c.0.s8 %v1770
    %v1772 = vlaneseq
    %v1773 = vshrl.u32 %v1772, 7
    %v1774 = vsub.s32 %v1771, %v1773
    %v1775 = vrot.slane %v1768, %v1774
    %v1781 = vadd.f32 %v1552, %v1716
    %v1782 = vadd.f32 %v1553, %v1733
    %v1783 = vadd.f32 %v1554, %v1750
    %v1784 = vadd.f32 %v1555, %v1767
    %v1785 = vadd.f32 %v1556, %v1775
    %1786 = vst [vmem:[%s5] sm:$0xff] %v1781
    %1787 = vst [vmem:[%s5 + $0x8] sm:$0xff] %v1782
    %1788 = vst [vmem:[%s5 + $0x10] sm:$0xff] %v1783
    %1789 = vst [vmem:[%s5 + $0x18] sm:$0xff] %v1784
    %1790 = vst [vmem:[%s5 + $0x20] sm:$0xf] %v1785
    %v1791 = vld [vmem:[%s5] sm:$0xff]
    %v1792 = vld [vmem:[%s5 + $0x8] sm:$0xff]
    %v1793 = vld [vmem:[%s5 + $0x10] sm:$0xff]
    %v1794 = vld [vmem:[%s5 + $0x18] sm:$0xff]
    %v1795 = vld [vmem:[%s5 + $0x20] sm:$0xf]
    %s1796 = scalar_lea.vmem [#allocation2], 6
    %v1797 = vld [vmem:[%s1796] ss:$8 sm:$0xf]
    %v1798 = vld [vmem:[%s1796] ss:$8 sm:$0xf0]
    %v1799 = vor.u32 %v1797, %v1798
    %s1800 = scalar_lea.vmem [#allocation2], 70
    %v1801 = vld [vmem:[%s1800] ss:$8 sm:$0xf]
    %v1802 = vld [vmem:[%s1800] ss:$8 sm:$0xf0]
    %v1803 = vor.u32 %v1801, %v1802
    %s1804 = scalar_lea.vmem [#allocation2], 134
    %v1805 = vld [vmem:[%s1804] ss:$8 sm:$0x3]
    %1806 = vset.pattern.permute.xlu0 6
    %1807 = vperm.xlu0 %1806, %v364
    %v1808 = vpop.permute.xlu0 %1807
    %v1813 = vlaneseq
    %v1814 = vshrl.u32 %v1813, 7
    %v1815 = vsub.s32 0, %v1814
    %v1816 = vrot.slane %v1799, %v1815
    %v1817 = vlaneseq
    %v1818 = vshrl.u32 %v1817, 7
    %v1819 = vsub.s32 1, %v1818
    %v1820 = vrot.slane %v1799, %v1819
    %v1821 = vlaneseq
    %v1822 = vshrl.u32 %v1821, 7
    %v1823 = vsub.s32 2, %v1822
    %v1824 = vrot.slane %v1799, %v1823
    %v1825 = vlaneseq
    %v1826 = vshrl.u32 %v1825, 7
    %v1827 = vsub.s32 3, %v1826
    %v1828 = vrot.slane %v1799, %v1827
    %v1829 = vlaneseq
    %v1830 = vshrl.u32 %v1829, 7
    %v1831 = vsub.s32 4, %v1830
    %v1832 = vrot.slane %v1799, %v1831
    %v1833 = vlaneseq
    %v1834 = vshrl.u32 %v1833, 7
    %v1835 = vsub.s32 5, %v1834
    %v1836 = vrot.slane %v1799, %v1835
    %v1837 = vlaneseq
    %v1838 = vshrl.u32 %v1837, 7
    %v1839 = vsub.s32 6, %v1838
    %v1840 = vrot.slane %v1799, %v1839
    %v1841 = vlaneseq
    %v1842 = vshrl.u32 %v1841, 7
    %v1843 = vsub.s32 7, %v1842
    %v1844 = vrot.slane %v1799, %v1843
    %v1845 = vlaneseq
    %v1846 = vshrl.u32 %v1845, 7
    %v1847 = vsub.s32 0, %v1846
    %v1848 = vrot.slane %v1803, %v1847
    %v1849 = vlaneseq
    %v1850 = vshrl.u32 %v1849, 7
    %v1851 = vsub.s32 1, %v1850
    %v1852 = vrot.slane %v1803, %v1851
    %v1853 = vlaneseq
    %v1854 = vshrl.u32 %v1853, 7
    %v1855 = vsub.s32 2, %v1854
    %v1856 = vrot.slane %v1803, %v1855
    %v1857 = vlaneseq
    %v1858 = vshrl.u32 %v1857, 7
    %v1859 = vsub.s32 3, %v1858
    %v1860 = vrot.slane %v1803, %v1859
    %v1861 = vlaneseq
    %v1862 = vshrl.u32 %v1861, 7
    %v1863 = vsub.s32 4, %v1862
    %v1864 = vrot.slane %v1803, %v1863
    %v1865 = vlaneseq
    %v1866 = vshrl.u32 %v1865, 7
    %v1867 = vsub.s32 5, %v1866
    %v1868 = vrot.slane %v1803, %v1867
    %v1869 = vlaneseq
    %v1870 = vshrl.u32 %v1869, 7
    %v1871 = vsub.s32 6, %v1870
    %v1872 = vrot.slane %v1803, %v1871
    %v1873 = vlaneseq
    %v1874 = vshrl.u32 %v1873, 7
    %v1875 = vsub.s32 7, %v1874
    %v1876 = vrot.slane %v1803, %v1875
    %v1877 = vlaneseq
    %v1878 = vshrl.u32 %v1877, 7
    %v1879 = vsub.s32 0, %v1878
    %v1880 = vrot.slane %v1805, %v1879
    %v1881 = vlaneseq
    %v1882 = vshrl.u32 %v1881, 7
    %v1883 = vsub.s32 1, %v1882
    %v1884 = vrot.slane %v1805, %v1883
    %v1903 = vmul.f32 %v1808, %v1816
    %v1904 = vmul.f32 %v1808, %v1820
    %v1905 = vmul.f32 %v1808, %v1824
    %v1906 = vmul.f32 %v1808, %v1828
    %v1907 = vmul.f32 %v1808, %v1832
    %v1908 = vmul.f32 %v1808, %v1836
    %v1909 = vmul.f32 %v1808, %v1840
    %v1910 = vmul.f32 %v1808, %v1844
    %v1911 = vmul.f32 %v1808, %v1848
    %v1912 = vmul.f32 %v1808, %v1852
    %v1913 = vmul.f32 %v1808, %v1856
    %v1914 = vmul.f32 %v1808, %v1860
    %v1915 = vmul.f32 %v1808, %v1864
    %v1916 = vmul.f32 %v1808, %v1868
    %v1917 = vmul.f32 %v1808, %v1872
    %v1918 = vmul.f32 %v1808, %v1876
    %v1919 = vmul.f32 %v1808, %v1880
    %v1920 = vmul.f32 %v1808, %v1884
    %v1939 = vcombine.low %v1903, %v1904
    %v1940 = vcombine.low %v1905, %v1906
    %v1942 = vunpack.c.l.s4 1983009808
    %v1943 = vunpack.c.0.s8 %v1942
    %v1944 = vlaneseq
    %v1945 = vshrl.u32 %v1944, 7
    %v1946 = vsub.s32 %v1943, %v1945
    %v1947 = vrot.slane %v1939, %v1946
    %v1949 = vunpack.c.l.s4 1983009808
    %v1950 = vunpack.c.0.s8 %v1949
    %v1951 = vlaneseq
    %v1952 = vshrl.u32 %v1951, 7
    %v1953 = vsub.s32 %v1950, %v1952
    %v1954 = vrot.slane %v1940, %v1953
    %v1955 = vcombine.low %v1947, %v1954
    %v1956 = vcombine.low %v1907, %v1908
    %v1957 = vcombine.low %v1909, %v1910
    %v1959 = vunpack.c.l.s4 1983009808
    %v1960 = vunpack.c.0.s8 %v1959
    %v1961 = vlaneseq
    %v1962 = vshrl.u32 %v1961, 7
    %v1963 = vsub.s32 %v1960, %v1962
    %v1964 = vrot.slane %v1956, %v1963
    %v1966 = vunpack.c.l.s4 1983009808
    %v1967 = vunpack.c.0.s8 %v1966
    %v1968 = vlaneseq
    %v1969 = vshrl.u32 %v1968, 7
    %v1970 = vsub.s32 %v1967, %v1969
    %v1971 = vrot.slane %v1957, %v1970
    %v1972 = vcombine.low %v1964, %v1971
    %v1973 = vcombine.low %v1911, %v1912
    %v1974 = vcombine.low %v1913, %v1914
    %v1976 = vunpack.c.l.s4 1983009808
    %v1977 = vunpack.c.0.s8 %v1976
    %v1978 = vlaneseq
    %v1979 = vshrl.u32 %v1978, 7
    %v1980 = vsub.s32 %v1977, %v1979
    %v1981 = vrot.slane %v1973, %v1980
    %v1983 = vunpack.c.l.s4 1983009808
    %v1984 = vunpack.c.0.s8 %v1983
    %v1985 = vlaneseq
    %v1986 = vshrl.u32 %v1985, 7
    %v1987 = vsub.s32 %v1984, %v1986
    %v1988 = vrot.slane %v1974, %v1987
    %v1989 = vcombine.low %v1981, %v1988
    %v1990 = vcombine.low %v1915, %v1916
    %v1991 = vcombine.low %v1917, %v1918
    %v1993 = vunpack.c.l.s4 1983009808
    %v1994 = vunpack.c.0.s8 %v1993
    %v1995 = vlaneseq
    %v1996 = vshrl.u32 %v1995, 7
    %v1997 = vsub.s32 %v1994, %v1996
    %v1998 = vrot.slane %v1990, %v1997
    %v2000 = vunpack.c.l.s4 1983009808
    %v2001 = vunpack.c.0.s8 %v2000
    %v2002 = vlaneseq
    %v2003 = vshrl.u32 %v2002, 7
    %v2004 = vsub.s32 %v2001, %v2003
    %v2005 = vrot.slane %v1991, %v2004
    %v2006 = vcombine.low %v1998, %v2005
    %v2007 = vcombine.low %v1919, %v1920
    %v2009 = vunpack.c.l.s4 1983009808
    %v2010 = vunpack.c.0.s8 %v2009
    %v2011 = vlaneseq
    %v2012 = vshrl.u32 %v2011, 7
    %v2013 = vsub.s32 %v2010, %v2012
    %v2014 = vrot.slane %v2007, %v2013
    %v2020 = vadd.f32 %v1791, %v1955
    %v2021 = vadd.f32 %v1792, %v1972
    %v2022 = vadd.f32 %v1793, %v1989
    %v2023 = vadd.f32 %v1794, %v2006
    %v2024 = vadd.f32 %v1795, %v2014
    %2025 = vst [vmem:[%s5] sm:$0xff] %v2020
    %2026 = vst [vmem:[%s5 + $0x8] sm:$0xff] %v2021
    %2027 = vst [vmem:[%s5 + $0x10] sm:$0xff] %v2022
    %2028 = vst [vmem:[%s5 + $0x18] sm:$0xff] %v2023
    %2029 = vst [vmem:[%s5 + $0x20] sm:$0xf] %v2024
    %v2030 = vld [vmem:[%s5] sm:$0xff]
    %v2031 = vld [vmem:[%s5 + $0x8] sm:$0xff]
    %v2032 = vld [vmem:[%s5 + $0x10] sm:$0xff]
    %v2033 = vld [vmem:[%s5 + $0x18] sm:$0xff]
    %v2034 = vld [vmem:[%s5 + $0x20] sm:$0xf]
    %s2035 = scalar_lea.vmem [#allocation2], 7
    %v2036 = vld [vmem:[%s2035] ss:$8 sm:$0xf]
    %v2037 = vld [vmem:[%s2035] ss:$8 sm:$0xf0]
    %v2038 = vor.u32 %v2036, %v2037
    %s2039 = scalar_lea.vmem [#allocation2], 71
    %v2040 = vld [vmem:[%s2039] ss:$8 sm:$0xf]
    %v2041 = vld [vmem:[%s2039] ss:$8 sm:$0xf0]
    %v2042 = vor.u32 %v2040, %v2041
    %s2043 = scalar_lea.vmem [#allocation2], 135
    %v2044 = vld [vmem:[%s2043] ss:$8 sm:$0x3]
    %2045 = vset.pattern.permute.xlu0 7
    %2046 = vperm.xlu0 %2045, %v364
    %v2047 = vpop.permute.xlu0 %2046
    %v2052 = vlaneseq
    %v2053 = vshrl.u32 %v2052, 7
    %v2054 = vsub.s32 0, %v2053
    %v2055 = vrot.slane %v2038, %v2054
    %v2056 = vlaneseq
    %v2057 = vshrl.u32 %v2056, 7
    %v2058 = vsub.s32 1, %v2057
    %v2059 = vrot.slane %v2038, %v2058
    %v2060 = vlaneseq
    %v2061 = vshrl.u32 %v2060, 7
    %v2062 = vsub.s32 2, %v2061
    %v2063 = vrot.slane %v2038, %v2062
    %v2064 = vlaneseq
    %v2065 = vshrl.u32 %v2064, 7
    %v2066 = vsub.s32 3, %v2065
    %v2067 = vrot.slane %v2038, %v2066
    %v2068 = vlaneseq
    %v2069 = vshrl.u32 %v2068, 7
    %v2070 = vsub.s32 4, %v2069
    %v2071 = vrot.slane %v2038, %v2070
    %v2072 = vlaneseq
    %v2073 = vshrl.u32 %v2072, 7
    %v2074 = vsub.s32 5, %v2073
    %v2075 = vrot.slane %v2038, %v2074
    %v2076 = vlaneseq
    %v2077 = vshrl.u32 %v2076, 7
    %v2078 = vsub.s32 6, %v2077
    %v2079 = vrot.slane %v2038, %v2078
    %v2080 = vlaneseq
    %v2081 = vshrl.u32 %v2080, 7
    %v2082 = vsub.s32 7, %v2081
    %v2083 = vrot.slane %v2038, %v2082
    %v2084 = vlaneseq
    %v2085 = vshrl.u32 %v2084, 7
    %v2086 = vsub.s32 0, %v2085
    %v2087 = vrot.slane %v2042, %v2086
    %v2088 = vlaneseq
    %v2089 = vshrl.u32 %v2088, 7
    %v2090 = vsub.s32 1, %v2089
    %v2091 = vrot.slane %v2042, %v2090
    %v2092 = vlaneseq
    %v2093 = vshrl.u32 %v2092, 7
    %v2094 = vsub.s32 2, %v2093
    %v2095 = vrot.slane %v2042, %v2094
    %v2096 = vlaneseq
    %v2097 = vshrl.u32 %v2096, 7
    %v2098 = vsub.s32 3, %v2097
    %v2099 = vrot.slane %v2042, %v2098
    %v2100 = vlaneseq
    %v2101 = vshrl.u32 %v2100, 7
    %v2102 = vsub.s32 4, %v2101
    %v2103 = vrot.slane %v2042, %v2102
    %v2104 = vlaneseq
    %v2105 = vshrl.u32 %v2104, 7
    %v2106 = vsub.s32 5, %v2105
    %v2107 = vrot.slane %v2042, %v2106
    %v2108 = vlaneseq
    %v2109 = vshrl.u32 %v2108, 7
    %v2110 = vsub.s32 6, %v2109
    %v2111 = vrot.slane %v2042, %v2110
    %v2112 = vlaneseq
    %v2113 = vshrl.u32 %v2112, 7
    %v2114 = vsub.s32 7, %v2113
    %v2115 = vrot.slane %v2042, %v2114
    %v2116 = vlaneseq
    %v2117 = vshrl.u32 %v2116, 7
    %v2118 = vsub.s32 0, %v2117
    %v2119 = vrot.slane %v2044, %v2118
    %v2120 = vlaneseq
    %v2121 = vshrl.u32 %v2120, 7
    %v2122 = vsub.s32 1, %v2121
    %v2123 = vrot.slane %v2044, %v2122
    %v2142 = vmul.f32 %v2047, %v2055
    %v2143 = vmul.f32 %v2047, %v2059
    %v2144 = vmul.f32 %v2047, %v2063
    %v2145 = vmul.f32 %v2047, %v2067
    %v2146 = vmul.f32 %v2047, %v2071
    %v2147 = vmul.f32 %v2047, %v2075
    %v2148 = vmul.f32 %v2047, %v2079
    %v2149 = vmul.f32 %v2047, %v2083
    %v2150 = vmul.f32 %v2047, %v2087
    %v2151 = vmul.f32 %v2047, %v2091
    %v2152 = vmul.f32 %v2047, %v2095
    %v2153 = vmul.f32 %v2047, %v2099
    %v2154 = vmul.f32 %v2047, %v2103
    %v2155 = vmul.f32 %v2047, %v2107
    %v2156 = vmul.f32 %v2047, %v2111
    %v2157 = vmul.f32 %v2047, %v2115
    %v2158 = vmul.f32 %v2047, %v2119
    %v2159 = vmul.f32 %v2047, %v2123
    %v2178 = vcombine.low %v2142, %v2143
    %v2179 = vcombine.low %v2144, %v2145
    %v2181 = vunpack.c.l.s4 1983009808
    %v2182 = vunpack.c.0.s8 %v2181
    %v2183 = vlaneseq
    %v2184 = vshrl.u32 %v2183, 7
    %v2185 = vsub.s32 %v2182, %v2184
    %v2186 = vrot.slane %v2178, %v2185
    %v2188 = vunpack.c.l.s4 1983009808
    %v2189 = vunpack.c.0.s8 %v2188
    %v2190 = vlaneseq
    %v2191 = vshrl.u32 %v2190, 7
    %v2192 = vsub.s32 %v2189, %v2191
    %v2193 = vrot.slane %v2179, %v2192
    %v2194 = vcombine.low %v2186, %v2193
    %v2195 = vcombine.low %v2146, %v2147
    %v2196 = vcombine.low %v2148, %v2149
    %v2198 = vunpack.c.l.s4 1983009808
    %v2199 = vunpack.c.0.s8 %v2198
    %v2200 = vlaneseq
    %v2201 = vshrl.u32 %v2200, 7
    %v2202 = vsub.s32 %v2199, %v2201
    %v2203 = vrot.slane %v2195, %v2202
    %v2205 = vunpack.c.l.s4 1983009808
    %v2206 = vunpack.c.0.s8 %v2205
    %v2207 = vlaneseq
    %v2208 = vshrl.u32 %v2207, 7
    %v2209 = vsub.s32 %v2206, %v2208
    %v2210 = vrot.slane %v2196, %v2209
    %v2211 = vcombine.low %v2203, %v2210
    %v2212 = vcombine.low %v2150, %v2151
    %v2213 = vcombine.low %v2152, %v2153
    %v2215 = vunpack.c.l.s4 1983009808
    %v2216 = vunpack.c.0.s8 %v2215
    %v2217 = vlaneseq
    %v2218 = vshrl.u32 %v2217, 7
    %v2219 = vsub.s32 %v2216, %v2218
    %v2220 = vrot.slane %v2212, %v2219
    %v2222 = vunpack.c.l.s4 1983009808
    %v2223 = vunpack.c.0.s8 %v2222
    %v2224 = vlaneseq
    %v2225 = vshrl.u32 %v2224, 7
    %v2226 = vsub.s32 %v2223, %v2225
    %v2227 = vrot.slane %v2213, %v2226
    %v2228 = vcombine.low %v2220, %v2227
    %v2229 = vcombine.low %v2154, %v2155
    %v2230 = vcombine.low %v2156, %v2157
    %v2232 = vunpack.c.l.s4 1983009808
    %v2233 = vunpack.c.0.s8 %v2232
    %v2234 = vlaneseq
    %v2235 = vshrl.u32 %v2234, 7
    %v2236 = vsub.s32 %v2233, %v2235
    %v2237 = vrot.slane %v2229, %v2236
    %v2239 = vunpack.c.l.s4 1983009808
    %v2240 = vunpack.c.0.s8 %v2239
    %v2241 = vlaneseq
    %v2242 = vshrl.u32 %v2241, 7
    %v2243 = vsub.s32 %v2240, %v2242
    %v2244 = vrot.slane %v2230, %v2243
    %v2245 = vcombine.low %v2237, %v2244
    %v2246 = vcombine.low %v2158, %v2159
    %v2248 = vunpack.c.l.s4 1983009808
    %v2249 = vunpack.c.0.s8 %v2248
    %v2250 = vlaneseq
    %v2251 = vshrl.u32 %v2250, 7
    %v2252 = vsub.s32 %v2249, %v2251
    %v2253 = vrot.slane %v2246, %v2252
    %v2259 = vadd.f32 %v2030, %v2194
    %v2260 = vadd.f32 %v2031, %v2211
    %v2261 = vadd.f32 %v2032, %v2228
    %v2262 = vadd.f32 %v2033, %v2245
    %v2263 = vadd.f32 %v2034, %v2253
    %2264 = vst [vmem:[%s5] sm:$0xff] %v2259
    %2265 = vst [vmem:[%s5 + $0x8] sm:$0xff] %v2260
    %2266 = vst [vmem:[%s5 + $0x10] sm:$0xff] %v2261
    %2267 = vst [vmem:[%s5 + $0x18] sm:$0xff] %v2262
    %2268 = vst [vmem:[%s5 + $0x20] sm:$0xf] %v2263
    // Predicated region
    $region22: #{lut_generator_forward.1} parent=1 // pred_check
      _
    $region23: #{lut_generator_forward.1} parent=1 // pred_check_branch
      %2270 = sbr.rel (0) target = $region25
    $region24: #{lut_generator_forward.1} parent=1 // pred_region
      %s2272 = ssub.s32 32, 32
      %2273 = vsyncadd [#allocation4], %s2272
      %s2275 = sshll.u32 [#allocation5], 4
      %s2276 = int_to_ptr.vmem [resolvable:$true] %s2275
      %2278 = dma.vmem_to_hbm [thread:$0]  %s2276, 32, %s4, [#allocation4]
    $region25: #{lut_generator_forward.1} parent=1 // pred_fallthru
      _
    // Predicated region
    $region26: #{lut_generator_forward.1} parent=1 // pred_check
      _
    $region27: #{lut_generator_forward.1} parent=1 // pred_check_branch
      %2280 = sbr.rel (0) target = $region29
    $region28: #{lut_generator_forward.1} parent=1 // pred_region
      _
    $region29: #{lut_generator_forward.1} parent=1 // pred_fallthru
      _
    // Predicated region
    $region30: #{lut_generator_forward.1} parent=1 // pred_check
      _
    $region31: #{lut_generator_forward.1} parent=1 // pred_check_branch
      %2282 = sbr.rel (0) target = $region33
    $region32: #{lut_generator_forward.1} parent=1 // pred_region
      %2283 = dma.done [#allocation4], 32
    $region33: #{lut_generator_forward.1} parent=1 // pred_fallthru
      _
    // Predicated region
    $region34: #{lut_generator_forward.1} parent=1 // pred_check
      _
    $region35: #{lut_generator_forward.1} parent=1 // pred_check_branch
      %2285 = sbr.rel (0) target = $region37
    $region36: #{lut_generator_forward.1} parent=1 // pred_region
      _
    $region37: #{lut_generator_forward.1} parent=1 // pred_fallthru
      _
    %2286 = vsyncpa [#allocation3], 1
    %2287 = vsyncpa [#allocation4], 1

</llo_original>
